<compile_context>
chip_gen: v6e
topology: v6e:2x2x1
jax: 0.10.0
libtpu: 0.0.40
codegen_flags: <defaults>
</compile_context>

<pallas_src>
import jax
import jax.numpy as jnp
from jax.experimental import pallas as pl
from jax.experimental.pallas import tpu as pltpu

NUM_CLASSES = 5
SEQUENCE_LENGTH = 8
HIDDEN = 512
IN_DIM = NUM_CLASSES + SEQUENCE_LENGTH   # 13
IN_PAD = 128                             # lane-aligned K for the first matmul
HEAD_PAD = 128                           # lane-dense fused-head output width


def _round_up(x, m):
    return (x + m - 1) // m * m


def _leaky_relu(x, slope=0.2):
    return jnp.where(x >= 0, x, slope * x)


def _choose_tile(batch):
    """Batch-tile selection.

    Small batches: one 8-aligned tile (single grid step).
    Large batches: tile is a multiple of 256 (full MXU row passes on the
    dominant 512x512 layers), capped at 1024 (v5e scoped-VMEM headroom), and
    sized so the grid has >= 2 steps (both v7x TensorCores get work)."""
    if batch <= 256:
        return _round_up(batch, 8)
    return min(1024, _round_up(pl.cdiv(batch, 2), 256))


def discriminator_kernel(
    din_ref,            # (TB, IN_PAD)      bf16 (zero-padded features)
    w1_ref, b1_ref,     # (IN_PAD, 512) bf16, (1, 512) f32
    w2_ref, b2_ref,     # (512, 512)    bf16, (1, 512) f32
    w3_ref, b3_ref,     # (512, 512)    bf16, (1, 512) f32
    wh_ref, bh_ref,     # (512, HEAD_PAD) bf16, (1, HEAD_PAD) f32 (fused heads)
    out_ref,            # (TB, HEAD_PAD)  bf16 raw head logits
):
    x = din_ref[...]

    # Linear(input_dim, 512) + LeakyReLU(0.2)
    h = jnp.dot(x, w1_ref[...], preferred_element_type=jnp.float32) + b1_ref[...]
    h = _leaky_relu(h)

    # Linear(512, 512) + Dropout(identity, eval) + LeakyReLU(0.2)
    h = jnp.dot(h.astype(jnp.bfloat16), w2_ref[...],
                preferred_element_type=jnp.float32) + b2_ref[...]
    h = _leaky_relu(h)

    # Linear(512, 512) + Dropout(identity, eval) + LeakyReLU(0.2)
    h = jnp.dot(h.astype(jnp.bfloat16), w3_ref[...],
                preferred_element_type=jnp.float32) + b3_ref[...]
    h = _leaky_relu(h)

    # Fused heads: one lane-dense (TB, 128) matmul. Raw logits only; the
    # sigmoid on the single validity lane happens in the wrapper.
    head = jnp.dot(h.astype(jnp.bfloat16), wh_ref[...],
                   preferred_element_type=jnp.float32) + bh_ref[...]
    out_ref[...] = head.astype(jnp.bfloat16)


def discriminator_forward(sequence, labels, params):
    """sequence: (B, seq_len) f32; labels: (B,) int32; params: packed (see pack_params)."""
    B = sequence.shape[0]

    # Glue: embedding lookup + concat + bf16 cast + lane padding (outside the kernel).
    # TODO(synk): could be folded into the kernel via PrefetchScalarGridSpec
    #             (labels as scalar prefetch) to avoid the padded HBM intermediate.
    label_embedding = jnp.take(params["emb"], labels, axis=0)        # (B, num_classes)
    d_in = jnp.concatenate([sequence, label_embedding], axis=-1)     # (B, 13)
    d_in = d_in.astype(jnp.bfloat16)
    d_in = jnp.pad(d_in, ((0, 0), (0, IN_PAD - d_in.shape[1])))      # (B, 128) bf16

    TB = _choose_tile(B)
    Bp = _round_up(B, TB)
    if Bp != B:
        d_in = jnp.pad(d_in, ((0, Bp - B), (0, 0)))
    grid = (Bp // TB,)

    w_bytes = (IN_PAD * HIDDEN + 2 * HIDDEN * HIDDEN + HIDDEN * HEAD_PAD) * 2
    b_bytes = (3 * HIDDEN + HEAD_PAD) * 4
    cost = pl.CostEstimate(
        flops=2 * Bp * (IN_PAD * HIDDEN + 2 * HIDDEN * HIDDEN + HIDDEN * HEAD_PAD),
        transcendentals=0,
        bytes_accessed=w_bytes + b_bytes + Bp * (IN_PAD + HEAD_PAD) * 2,
    )

    # Constant-index weight/bias blocks: fetched once, single-buffered.
    def _resident(shape):
        return pl.BlockSpec(shape, lambda i: (0, 0), pipeline_mode=pl.Buffered(1))

    out = pl.pallas_call(
        discriminator_kernel,
        out_shape=jax.ShapeDtypeStruct((Bp, HEAD_PAD), jnp.bfloat16),
        grid=grid,
        in_specs=[
            pl.BlockSpec((TB, IN_PAD), lambda i: (i, 0)),   # activations stream (bf16)
            _resident((IN_PAD, HIDDEN)),                    # w1
            _resident((1, HIDDEN)),                         # b1
            _resident((HIDDEN, HIDDEN)),                    # w2
            _resident((1, HIDDEN)),                         # b2
            _resident((HIDDEN, HIDDEN)),                    # w3
            _resident((1, HIDDEN)),                         # b3
            _resident((HIDDEN, HEAD_PAD)),                  # fused head weight
            _resident((1, HEAD_PAD)),                       # fused head bias
        ],
        out_specs=pl.BlockSpec((TB, HEAD_PAD), lambda i: (i, 0)),
        compiler_params=pltpu.CompilerParams(
            dimension_semantics=("parallel",),
            vmem_limit_bytes=32 * 1024 * 1024,
        ),
        cost_estimate=cost,
    )(
        d_in,
        params["w1"], params["b1"],
        params["w2"], params["b2"],
        params["w3"], params["b3"],
        params["wh"], params["bh"],
    )

    head = out[:B].astype(jnp.float32)
    validity = jax.nn.sigmoid(head[:, 0:1])
    aux = head[:, 1:1 + NUM_CLASSES]
    return validity, aux


def init_params(key):
    """Raw f32 parameters (shapes follow the PyTorch module, weights pre-transposed)."""
    ks = jax.random.split(key, 12)

    def lin(kw, kb, fan_in, fan_out):
        # uniform(-1/sqrt(fan_in), 1/sqrt(fan_in)) like torch.nn.Linear default
        bound = 1.0 / jnp.sqrt(fan_in)
        w = jax.random.uniform(kw, (fan_in, fan_out), jnp.float32, -bound, bound)
        b = jax.random.uniform(kb, (1, fan_out), jnp.float32, -bound, bound)
        return w, b

    w1, b1 = lin(ks[0], ks[1], IN_DIM, HIDDEN)
    w2, b2 = lin(ks[2], ks[3], HIDDEN, HIDDEN)
    w3, b3 = lin(ks[4], ks[5], HIDDEN, HIDDEN)
    wv, bv = lin(ks[6], ks[7], HIDDEN, 1)
    wa, ba = lin(ks[8], ks[9], HIDDEN, NUM_CLASSES)
    emb = jax.random.normal(ks[10], (NUM_CLASSES, NUM_CLASSES), jnp.float32)

    return dict(emb=emb, w1=w1, b1=b1, w2=w2, b2=b2, w3=w3, b3=b3,
                wv=wv, bv=bv, wa=wa, ba=ba)


def pack_params(raw):
    """Convert raw params into the kernel layout:
       - w1 rows zero-padded 13 -> 128 (matches lane-padded input),
       - validity + aux heads fused and zero-padded to (512, 128),
       - all weights bf16, biases f32."""
    w1p = jnp.zeros((IN_PAD, HIDDEN), jnp.float32).at[:IN_DIM].set(raw["w1"])

    wh = jnp.zeros((HIDDEN, HEAD_PAD), jnp.float32)
    wh = wh.at[:, 0:1].set(raw["wv"]).at[:, 1:1 + NUM_CLASSES].set(raw["wa"])
    bh = jnp.zeros((1, HEAD_PAD), jnp.float32)
    bh = bh.at[:, 0:1].set(raw["bv"]).at[:, 1:1 + NUM_CLASSES].set(raw["ba"])

    return dict(
        emb=raw["emb"],
        w1=w1p.astype(jnp.bfloat16), b1=raw["b1"],
        w2=raw["w2"].astype(jnp.bfloat16), b2=raw["b2"],
        w3=raw["w3"].astype(jnp.bfloat16), b3=raw["b3"],
        wh=wh.astype(jnp.bfloat16), bh=bh,
    )


def _reference_forward(sequence, labels, packed):
    """Pure-JAX reference mirroring the kernel's mixed precision (bf16 weights,
    bf16 dot inputs, f32 accumulate + elementwise, bf16 head writeback)."""
    def bf(x):
        return x.astype(jnp.bfloat16).astype(jnp.float32)

    emb = jnp.take(packed["emb"], labels, axis=0)
    x = jnp.concatenate([sequence, emb], axis=-1).astype(jnp.bfloat16)
    x = jnp.pad(x, ((0, 0), (0, IN_PAD - x.shape[1]))).astype(jnp.float32)

    h = _leaky_relu(x @ packed["w1"].astype(jnp.float32) + packed["b1"])
    h = _leaky_relu(bf(h) @ packed["w2"].astype(jnp.float32) + packed["b2"])
    h = _leaky_relu(bf(h) @ packed["w3"].astype(jnp.float32) + packed["b3"])
    head = bf(h) @ packed["wh"].astype(jnp.float32) + packed["bh"]
    head = head.astype(jnp.bfloat16).astype(jnp.float32)
    validity = jax.nn.sigmoid(head[:, 0:1])
    aux = head[:, 1:1 + NUM_CLASSES]
    return validity, aux


if __name__ == "__main__":
    key = jax.random.PRNGKey(0)
    k_param, k_seq, k_lab = jax.random.split(key, 3)

    B = 8
    raw_params = init_params(k_param)
    params = pack_params(raw_params)
    sequence = jax.random.normal(k_seq, (B, SEQUENCE_LENGTH), jnp.float32)
    labels = jax.random.randint(k_lab, (B,), 0, NUM_CLASSES, jnp.int32)

    validity, aux = discriminator_forward(sequence, labels, params)
    jax.block_until_ready((validity, aux))

    ref_v, ref_a = _reference_forward(sequence, labels, params)
    assert validity.shape == (B, 1) and aux.shape == (B, NUM_CLASSES)
    assert jnp.allclose(validity, ref_v, atol=5e-3, rtol=5e-3), (
        float(jnp.max(jnp.abs(validity - ref_v))))
    assert jnp.allclose(aux, ref_a, atol=1e-2, rtol=1e-2), (
        float(jnp.max(jnp.abs(aux - ref_a))))

    print("KERNEL_OK")
</pallas_src>

<mosaic_0001>
module attributes {stable_mosaic.version = 11 : i64} {
  func.func @discriminator_kernel(%arg0: i32, %arg1: memref<8x128xbf16, #tpu.memory_space<vmem>>, %arg2: memref<128x512xbf16, #tpu.memory_space<vmem>>, %arg3: memref<1x512xf32, #tpu.memory_space<vmem>>, %arg4: memref<512x512xbf16, #tpu.memory_space<vmem>>, %arg5: memref<1x512xf32, #tpu.memory_space<vmem>>, %arg6: memref<512x512xbf16, #tpu.memory_space<vmem>>, %arg7: memref<1x512xf32, #tpu.memory_space<vmem>>, %arg8: memref<512x128xbf16, #tpu.memory_space<vmem>>, %arg9: memref<1x128xf32, #tpu.memory_space<vmem>>, %arg10: memref<8x128xbf16, #tpu.memory_space<vmem>>) attributes {dimension_semantics = [#tpu.dimension_semantics<parallel>], iteration_bounds = array<i64: 1>, scalar_prefetch = 0 : i64, scratch_operands = 0 : i64, tpu.core_type = #tpu.core_type<tc>, window_params = [{transform_indices = @transform_0, window_bounds = array<i64: 8, 128>}, {pipeline_mode = #tpu.pipeline_mode<synchronous>, transform_indices = @transform_1, window_bounds = array<i64: 128, 512>}, {pipeline_mode = #tpu.pipeline_mode<synchronous>, transform_indices = @transform_2, window_bounds = array<i64: 1, 512>}, {pipeline_mode = #tpu.pipeline_mode<synchronous>, transform_indices = @transform_3, window_bounds = array<i64: 512, 512>}, {pipeline_mode = #tpu.pipeline_mode<synchronous>, transform_indices = @transform_4, window_bounds = array<i64: 1, 512>}, {pipeline_mode = #tpu.pipeline_mode<synchronous>, transform_indices = @transform_5, window_bounds = array<i64: 512, 512>}, {pipeline_mode = #tpu.pipeline_mode<synchronous>, transform_indices = @transform_6, window_bounds = array<i64: 1, 512>}, {pipeline_mode = #tpu.pipeline_mode<synchronous>, transform_indices = @transform_7, window_bounds = array<i64: 512, 128>}, {pipeline_mode = #tpu.pipeline_mode<synchronous>, transform_indices = @transform_8, window_bounds = array<i64: 1, 128>}, {transform_indices = @transform_9, window_bounds = array<i64: 8, 128>}]} {
    %c0 = arith.constant 0 : index
    %c0_0 = arith.constant 0 : index
    %0 = vector.load %arg1[%c0, %c0_0] : memref<8x128xbf16, #tpu.memory_space<vmem>>, vector<8x128xbf16>
    %c0_1 = arith.constant 0 : index
    %c0_2 = arith.constant 0 : index
    %1 = vector.load %arg2[%c0_1, %c0_2] : memref<128x512xbf16, #tpu.memory_space<vmem>>, vector<128x512xbf16>
    %cst = arith.constant dense<0.000000e+00> : vector<8x512xf32>
    %2 = tpu.matmul %0, %1, %cst {dimension_numbers = #tpu.dot_dimension_numbers<[1], [0], [0], [1], [0, 0, 1, 1], [], []>} : vector<8x128xbf16>, vector<128x512xbf16>, vector<8x512xf32> -> vector<8x512xf32>
    %c0_3 = arith.constant 0 : index
    %c0_4 = arith.constant 0 : index
    %3 = vector.load %arg3[%c0_3, %c0_4] : memref<1x512xf32, #tpu.memory_space<vmem>>, vector<1x512xf32>
    %4 = vector.broadcast %3 : vector<1x512xf32> to vector<8x512xf32>
    %5 = arith.addf %2, %4 : vector<8x512xf32>
    %cst_5 = arith.constant 0.000000e+00 : f32
    %6 = vector.broadcast %cst_5 : f32 to vector<8x512xf32>
    %7 = arith.cmpf oge, %5, %6 : vector<8x512xf32>
    %cst_6 = arith.constant 2.000000e-01 : f32
    %8 = vector.broadcast %cst_6 : f32 to vector<8x512xf32>
    %9 = arith.mulf %8, %5 : vector<8x512xf32>
    %10 = arith.select %7, %5, %9 : vector<8x512xi1>, vector<8x512xf32>
    %11 = arith.truncf %10 : vector<8x512xf32> to vector<8x512xbf16>
    %c0_7 = arith.constant 0 : index
    %c0_8 = arith.constant 0 : index
    %12 = vector.load %arg4[%c0_7, %c0_8] : memref<512x512xbf16, #tpu.memory_space<vmem>>, vector<512x512xbf16>
    %cst_9 = arith.constant dense<0.000000e+00> : vector<8x512xf32>
    %13 = tpu.matmul %11, %12, %cst_9 {dimension_numbers = #tpu.dot_dimension_numbers<[1], [0], [0], [1], [0, 0, 1, 1], [], []>} : vector<8x512xbf16>, vector<512x512xbf16>, vector<8x512xf32> -> vector<8x512xf32>
    %c0_10 = arith.constant 0 : index
    %c0_11 = arith.constant 0 : index
    %14 = vector.load %arg5[%c0_10, %c0_11] : memref<1x512xf32, #tpu.memory_space<vmem>>, vector<1x512xf32>
    %15 = vector.broadcast %14 : vector<1x512xf32> to vector<8x512xf32>
    %16 = arith.addf %13, %15 : vector<8x512xf32>
    %cst_12 = arith.constant 0.000000e+00 : f32
    %17 = vector.broadcast %cst_12 : f32 to vector<8x512xf32>
    %18 = arith.cmpf oge, %16, %17 : vector<8x512xf32>
    %cst_13 = arith.constant 2.000000e-01 : f32
    %19 = vector.broadcast %cst_13 : f32 to vector<8x512xf32>
    %20 = arith.mulf %19, %16 : vector<8x512xf32>
    %21 = arith.select %18, %16, %20 : vector<8x512xi1>, vector<8x512xf32>
    %22 = arith.truncf %21 : vector<8x512xf32> to vector<8x512xbf16>
    %c0_14 = arith.constant 0 : index
    %c0_15 = arith.constant 0 : index
    %23 = vector.load %arg6[%c0_14, %c0_15] : memref<512x512xbf16, #tpu.memory_space<vmem>>, vector<512x512xbf16>
    %cst_16 = arith.constant dense<0.000000e+00> : vector<8x512xf32>
    %24 = tpu.matmul %22, %23, %cst_16 {dimension_numbers = #tpu.dot_dimension_numbers<[1], [0], [0], [1], [0, 0, 1, 1], [], []>} : vector<8x512xbf16>, vector<512x512xbf16>, vector<8x512xf32> -> vector<8x512xf32>
    %c0_17 = arith.constant 0 : index
    %c0_18 = arith.constant 0 : index
    %25 = vector.load %arg7[%c0_17, %c0_18] : memref<1x512xf32, #tpu.memory_space<vmem>>, vector<1x512xf32>
    %26 = vector.broadcast %25 : vector<1x512xf32> to vector<8x512xf32>
    %27 = arith.addf %24, %26 : vector<8x512xf32>
    %cst_19 = arith.constant 0.000000e+00 : f32
    %28 = vector.broadcast %cst_19 : f32 to vector<8x512xf32>
    %29 = arith.cmpf oge, %27, %28 : vector<8x512xf32>
    %cst_20 = arith.constant 2.000000e-01 : f32
    %30 = vector.broadcast %cst_20 : f32 to vector<8x512xf32>
    %31 = arith.mulf %30, %27 : vector<8x512xf32>
    %32 = arith.select %29, %27, %31 : vector<8x512xi1>, vector<8x512xf32>
    %33 = arith.truncf %32 : vector<8x512xf32> to vector<8x512xbf16>
    %c0_21 = arith.constant 0 : index
    %c0_22 = arith.constant 0 : index
    %34 = vector.load %arg8[%c0_21, %c0_22] : memref<512x128xbf16, #tpu.memory_space<vmem>>, vector<512x128xbf16>
    %cst_23 = arith.constant dense<0.000000e+00> : vector<8x128xf32>
    %35 = tpu.matmul %33, %34, %cst_23 {dimension_numbers = #tpu.dot_dimension_numbers<[1], [0], [0], [1], [0, 0, 1, 1], [], []>} : vector<8x512xbf16>, vector<512x128xbf16>, vector<8x128xf32> -> vector<8x128xf32>
    %c0_24 = arith.constant 0 : index
    %c0_25 = arith.constant 0 : index
    %36 = vector.load %arg9[%c0_24, %c0_25] : memref<1x128xf32, #tpu.memory_space<vmem>>, vector<1x128xf32>
    %37 = vector.broadcast %36 : vector<1x128xf32> to vector<8x128xf32>
    %38 = arith.addf %35, %37 : vector<8x128xf32>
    %39 = arith.truncf %38 : vector<8x128xf32> to vector<8x128xbf16>
    %c0_26 = arith.constant 0 : index
    %c0_27 = arith.constant 0 : index
    %40 = vector.load %arg10[%c0_26, %c0_27] : memref<8x128xbf16, #tpu.memory_space<vmem>>, vector<8x128xbf16>
    tpu.vector_store %arg10[%c0_26, %c0_27], %39 {strides = array<i32>} : memref<8x128xbf16, #tpu.memory_space<vmem>>, vector<8x128xbf16>,
    return
  }
  func.func @transform_0(%arg0: i32) -> (i32, i32) {
    %c0_i32 = arith.constant 0 : i32
    %c0_i32_0 = arith.constant 0 : i32
    return %arg0, %c0_i32 : i32, i32
  }
  func.func @transform_1(%arg0: i32) -> (i32, i32) {
    %c0_i32 = arith.constant 0 : i32
    %c0_i32_0 = arith.constant 0 : i32
    %c0_i32_1 = arith.constant 0 : i32
    return %c0_i32, %c0_i32_0 : i32, i32
  }
  func.func @transform_2(%arg0: i32) -> (i32, i32) {
    %c0_i32 = arith.constant 0 : i32
    %c0_i32_0 = arith.constant 0 : i32
    %c0_i32_1 = arith.constant 0 : i32
    return %c0_i32, %c0_i32_0 : i32, i32
  }
  func.func @transform_3(%arg0: i32) -> (i32, i32) {
    %c0_i32 = arith.constant 0 : i32
    %c0_i32_0 = arith.constant 0 : i32
    %c0_i32_1 = arith.constant 0 : i32
    return %c0_i32, %c0_i32_0 : i32, i32
  }
  func.func @transform_4(%arg0: i32) -> (i32, i32) {
    %c0_i32 = arith.constant 0 : i32
    %c0_i32_0 = arith.constant 0 : i32
    %c0_i32_1 = arith.constant 0 : i32
    return %c0_i32, %c0_i32_0 : i32, i32
  }
  func.func @transform_5(%arg0: i32) -> (i32, i32) {
    %c0_i32 = arith.constant 0 : i32
    %c0_i32_0 = arith.constant 0 : i32
    %c0_i32_1 = arith.constant 0 : i32
    return %c0_i32, %c0_i32_0 : i32, i32
  }
  func.func @transform_6(%arg0: i32) -> (i32, i32) {
    %c0_i32 = arith.constant 0 : i32
    %c0_i32_0 = arith.constant 0 : i32
    %c0_i32_1 = arith.constant 0 : i32
    return %c0_i32, %c0_i32_0 : i32, i32
  }
  func.func @transform_7(%arg0: i32) -> (i32, i32) {
    %c0_i32 = arith.constant 0 : i32
    %c0_i32_0 = arith.constant 0 : i32
    %c0_i32_1 = arith.constant 0 : i32
    return %c0_i32, %c0_i32_0 : i32, i32
  }
  func.func @transform_8(%arg0: i32) -> (i32, i32) {
    %c0_i32 = arith.constant 0 : i32
    %c0_i32_0 = arith.constant 0 : i32
    %c0_i32_1 = arith.constant 0 : i32
    return %c0_i32, %c0_i32_0 : i32, i32
  }
  func.func @transform_9(%arg0: i32) -> (i32, i32) {
    %c0_i32 = arith.constant 0 : i32
    %c0_i32_0 = arith.constant 0 : i32
    return %arg0, %c0_i32 : i32, i32
  }
}

</mosaic_0001>

<llo_original>
// kernel: tpu_custom_call.1
$region0: #{tpu_custom_call.1}
  #allocation0 [shape = 'u32[]', space=smem, size = 0x4, offset = 0x4, fixed_abs, tag = 'smem constant byte address 0x4 - core index']
  #allocation1 [shape = 'u32[144,128]{1,0:T(1,128)}', space=vmem, size = 0x12000, scoped, tag = 'internal scratch']
  %s0 = inlined_call_operand.hbm [shape: bf16[8,128], index: 0, kind: input, shape index: {}]
  %s1 = inlined_call_operand.hbm [shape: bf16[128,512], index: 1, kind: input, shape index: {}]
  %s2 = inlined_call_operand.hbm [shape: f32[1,512], index: 2, kind: input, shape index: {}]
  %s3 = inlined_call_operand.hbm [shape: bf16[512,512], index: 3, kind: input, shape index: {}]
  %s4 = inlined_call_operand.vmem [shape: f32[1,512], index: 4, kind: input, shape index: {}]
  %s5 = inlined_call_operand.hbm [shape: bf16[512,512], index: 5, kind: input, shape index: {}]
  %s6 = inlined_call_operand.vmem [shape: f32[1,512], index: 6, kind: input, shape index: {}]
  %s7 = inlined_call_operand.hbm [shape: bf16[512,128], index: 7, kind: input, shape index: {}]
  %s8 = inlined_call_operand.vmem [shape: f32[1,128], index: 8, kind: input, shape index: {}]
  %s9 = inlined_call_operand.hbm [shape: bf16[8,128], index: 9, kind: output, shape index: {}]
  %s10 = sld [smem:[#allocation0]]
  $region70: #{tpu_custom_call.1} parent=0
    _
  %s12 = ssub.s32 1, %s10
  %s13 = scalar_select 0, %s12, %s10
  $region1: #{tpu_custom_call.1} parent=0
    #allocation2 [shape = 'u8[2048]{0}', space=vmem, size = 0x800, scoped, tag = 'input window, operand 0, single buffered']
    #allocation3 [shape = 's32[1]{0}', space=sflag, size = 0x4, scoped, tag = 'scoped memory for tpu_custom_call.1']
    #allocation4 [shape = 's32[1]{0}', space=sflag, size = 0x4, scoped, tag = 'scoped memory for tpu_custom_call.1']
    #allocation5 [shape = 'u8[131072]{0}', space=vmem, size = 0x20000, scoped, tag = 'input window, operand 1, single buffered']
    #allocation6 [shape = 's32[1]{0}', space=sflag, size = 0x4, scoped, tag = 'scoped memory for tpu_custom_call.1']
    #allocation7 [shape = 'u8[2048]{0}', space=vmem, size = 0x800, scoped, tag = 'input window, operand 2, single buffered']
    #allocation8 [shape = 'u8[524288]{0}', space=vmem, size = 0x80000, scoped, tag = 'input window, operand 3, single buffered']
    #allocation9 [shape = 's32[1]{0}', space=sflag, size = 0x4, scoped, tag = 'scoped memory for tpu_custom_call.1']
    #allocation10 [shape = 'u8[524288]{0}', space=vmem, size = 0x80000, scoped, tag = 'input window, operand 5, single buffered']
    #allocation11 [shape = 'u8[131072]{0}', space=vmem, size = 0x20000, scoped, tag = 'input window, operand 7, single buffered']
    #allocation12 [shape = 's32[1]{0}', space=sflag, size = 0x4, scoped, tag = 'scoped memory for tpu_custom_call.1']
    #allocation13 [shape = 'u8[2048]{0}', space=vmem, size = 0x800, scoped, tag = 'output window, operand 0, single buffered']
    %14 = vsyncpa [#allocation3], 0
    %15 = vsyncpa [#allocation6], 0
    %16 = vsyncpa [#allocation9], 0
    %17 = vsyncpa [#allocation12], 0
    %18 = vsyncpa [#allocation4], 0
    // Predicated region
    $region2: #{tpu_custom_call.1} parent=1 // pred_check
      _
    $region3: #{tpu_custom_call.1} parent=1 // pred_check_branch
      %20 = sbr.rel (0) target = $region5
    $region4: #{tpu_custom_call.1} parent=1 // pred_region
      %s22 = ssub.s32 64, 64
      %23 = vsyncadd [#allocation3], %s22
      %s25 = sshll.u32 [#allocation2], 4
      %s26 = int_to_ptr.vmem [resolvable:$true] %s25
      %28 = dma.hbm_to_vmem [thread:$0]  %s0, 64, %s26, [#allocation3]
    $region5: #{tpu_custom_call.1} parent=1 // pred_fallthru
      _
    // Predicated region
    $region6: #{tpu_custom_call.1} parent=1 // pred_check
      _
    $region7: #{tpu_custom_call.1} parent=1 // pred_check_branch
      %30 = sbr.rel (0) target = $region9
    $region8: #{tpu_custom_call.1} parent=1 // pred_region
      %s32 = ssub.s32 4096, 4096
      %33 = vsyncadd [#allocation6], %s32
      %s34 = sshll.u32 [#allocation5], 4
      %s35 = int_to_ptr.vmem [resolvable:$true] %s34
      %40 = dma.hbm_to_vmem [thread:$0]  %s1, 4096, %s35, [#allocation6], 256, 256, 16
    $region9: #{tpu_custom_call.1} parent=1 // pred_fallthru
      _
    // Predicated region
    $region10: #{tpu_custom_call.1} parent=1 // pred_check
      _
    $region11: #{tpu_custom_call.1} parent=1 // pred_check_branch
      %42 = sbr.rel (0) target = $region13
    $region12: #{tpu_custom_call.1} parent=1 // pred_region
      %s44 = ssub.s32 64, 64
      %45 = vsyncadd [#allocation6], %s44
      %s47 = sshll.u32 [#allocation7], 4
      %s48 = int_to_ptr.vmem [resolvable:$true] %s47
      %50 = dma.hbm_to_vmem [thread:$0]  %s2, 64, %s48, [#allocation6]
    $region13: #{tpu_custom_call.1} parent=1 // pred_fallthru
      _
    // Predicated region
    $region14: #{tpu_custom_call.1} parent=1 // pred_check
      _
    $region15: #{tpu_custom_call.1} parent=1 // pred_check_branch
      %52 = sbr.rel (0) target = $region17
    $region16: #{tpu_custom_call.1} parent=1 // pred_region
      %s54 = ssub.s32 16384, 16384
      %55 = vsyncadd [#allocation9], %s54
      %s56 = sshll.u32 [#allocation8], 4
      %s57 = int_to_ptr.vmem [resolvable:$true] %s56
      %62 = dma.hbm_to_vmem [thread:$0]  %s3, 16384, %s57, [#allocation9], 256, 256, 16
    $region17: #{tpu_custom_call.1} parent=1 // pred_fallthru
      _
    // Predicated region
    $region18: #{tpu_custom_call.1} parent=1 // pred_check
      _
    $region19: #{tpu_custom_call.1} parent=1 // pred_check_branch
      %64 = sbr.rel (0) target = $region21
    $region20: #{tpu_custom_call.1} parent=1 // pred_region
      _
    $region21: #{tpu_custom_call.1} parent=1 // pred_fallthru
      _
    // Predicated region
    $region22: #{tpu_custom_call.1} parent=1 // pred_check
      _
    $region23: #{tpu_custom_call.1} parent=1 // pred_check_branch
      %66 = sbr.rel (0) target = $region25
    $region24: #{tpu_custom_call.1} parent=1 // pred_region
      %s68 = ssub.s32 16384, 16384
      %69 = vsyncadd [#allocation9], %s68
      %s70 = sshll.u32 [#allocation10], 4
      %s71 = int_to_ptr.vmem [resolvable:$true] %s70
      %76 = dma.hbm_to_vmem [thread:$0]  %s5, 16384, %s71, [#allocation9], 256, 256, 16
    $region25: #{tpu_custom_call.1} parent=1 // pred_fallthru
      _
    // Predicated region
    $region26: #{tpu_custom_call.1} parent=1 // pred_check
      _
    $region27: #{tpu_custom_call.1} parent=1 // pred_check_branch
      %78 = sbr.rel (0) target = $region29
    $region28: #{tpu_custom_call.1} parent=1 // pred_region
      _
    $region29: #{tpu_custom_call.1} parent=1 // pred_fallthru
      _
    // Predicated region
    $region30: #{tpu_custom_call.1} parent=1 // pred_check
      _
    $region31: #{tpu_custom_call.1} parent=1 // pred_check_branch
      %80 = sbr.rel (0) target = $region33
    $region32: #{tpu_custom_call.1} parent=1 // pred_region
      %s82 = ssub.s32 4096, 4096
      %83 = vsyncadd [#allocation12], %s82
      %s84 = sshll.u32 [#allocation11], 4
      %s85 = int_to_ptr.vmem [resolvable:$true] %s84
      %90 = dma.hbm_to_vmem [thread:$0]  %s7, 4096, %s85, [#allocation12], 64, 64, 4
    $region33: #{tpu_custom_call.1} parent=1 // pred_fallthru
      _
    // Predicated region
    $region34: #{tpu_custom_call.1} parent=1 // pred_check
      _
    $region35: #{tpu_custom_call.1} parent=1 // pred_check_branch
      %92 = sbr.rel (0) target = $region37
    $region36: #{tpu_custom_call.1} parent=1 // pred_region
      _
    $region37: #{tpu_custom_call.1} parent=1 // pred_fallthru
      _
    // Predicated region
    $region38: #{tpu_custom_call.1} parent=1 // pred_check
      _
    $region39: #{tpu_custom_call.1} parent=1 // pred_check_branch
      %94 = sbr.rel (0) target = $region41
    $region40: #{tpu_custom_call.1} parent=1 // pred_region
      %95 = dma.done [#allocation3], 64
    $region41: #{tpu_custom_call.1} parent=1 // pred_fallthru
      _
    // Predicated region
    $region42: #{tpu_custom_call.1} parent=1 // pred_check
      _
    $region43: #{tpu_custom_call.1} parent=1 // pred_check_branch
      %97 = sbr.rel (0) target = $region45
    $region44: #{tpu_custom_call.1} parent=1 // pred_region
      %98 = dma.done [#allocation6], 4096
    $region45: #{tpu_custom_call.1} parent=1 // pred_fallthru
      _
    // Predicated region
    $region46: #{tpu_custom_call.1} parent=1 // pred_check
      _
    $region47: #{tpu_custom_call.1} parent=1 // pred_check_branch
      %100 = sbr.rel (0) target = $region49
    $region48: #{tpu_custom_call.1} parent=1 // pred_region
      %101 = dma.done [#allocation6], 64
    $region49: #{tpu_custom_call.1} parent=1 // pred_fallthru
      _
    // Predicated region
    $region50: #{tpu_custom_call.1} parent=1 // pred_check
      _
    $region51: #{tpu_custom_call.1} parent=1 // pred_check_branch
      %103 = sbr.rel (0) target = $region53
    $region52: #{tpu_custom_call.1} parent=1 // pred_region
      %104 = dma.done [#allocation9], 16384
    $region53: #{tpu_custom_call.1} parent=1 // pred_fallthru
      _
    // Predicated region
    $region54: #{tpu_custom_call.1} parent=1 // pred_check
      _
    $region55: #{tpu_custom_call.1} parent=1 // pred_check_branch
      %106 = sbr.rel (0) target = $region57
    $region56: #{tpu_custom_call.1} parent=1 // pred_region
      %107 = dma.done [#allocation9], 16384
    $region57: #{tpu_custom_call.1} parent=1 // pred_fallthru
      _
    // Predicated region
    $region58: #{tpu_custom_call.1} parent=1 // pred_check
      _
    $region59: #{tpu_custom_call.1} parent=1 // pred_check_branch
      %109 = sbr.rel (0) target = $region61
    $region60: #{tpu_custom_call.1} parent=1 // pred_region
      %110 = dma.done [#allocation12], 4096
    $region61: #{tpu_custom_call.1} parent=1 // pred_fallthru
      _
    %v112 = vld [vmem:[#allocation2] sm:$0xf]
    %v113 = vld [vmem:[#allocation5] sm:$0xff]
    %v114 = vld [vmem:[#allocation5 + $0x8] sm:$0xff]
    %v115 = vld [vmem:[#allocation5 + $0x10] sm:$0xff]
    %v116 = vld [vmem:[#allocation5 + $0x18] sm:$0xff]
    %v117 = vld [vmem:[#allocation5 + $0x20] sm:$0xff]
    %v118 = vld [vmem:[#allocation5 + $0x28] sm:$0xff]
    %v119 = vld [vmem:[#allocation5 + $0x30] sm:$0xff]
    %v120 = vld [vmem:[#allocation5 + $0x38] sm:$0xff]
    %v121 = vld [vmem:[#allocation5 + $0x40] sm:$0xff]
    %v122 = vld [vmem:[#allocation5 + $0x48] sm:$0xff]
    %v123 = vld [vmem:[#allocation5 + $0x50] sm:$0xff]
    %v124 = vld [vmem:[#allocation5 + $0x58] sm:$0xff]
    %v125 = vld [vmem:[#allocation5 + $0x60] sm:$0xff]
    %v126 = vld [vmem:[#allocation5 + $0x68] sm:$0xff]
    %v127 = vld [vmem:[#allocation5 + $0x70] sm:$0xff]
    %v128 = vld [vmem:[#allocation5 + $0x78] sm:$0xff]
    %v129 = vld [vmem:[#allocation5 + $0x80] sm:$0xff]
    %v130 = vld [vmem:[#allocation5 + $0x88] sm:$0xff]
    %v131 = vld [vmem:[#allocation5 + $0x90] sm:$0xff]
    %v132 = vld [vmem:[#allocation5 + $0x98] sm:$0xff]
    %v133 = vld [vmem:[#allocation5 + $0xa0] sm:$0xff]
    %v134 = vld [vmem:[#allocation5 + $0xa8] sm:$0xff]
    %v135 = vld [vmem:[#allocation5 + $0xb0] sm:$0xff]
    %v136 = vld [vmem:[#allocation5 + $0xb8] sm:$0xff]
    %v137 = vld [vmem:[#allocation5 + $0xc0] sm:$0xff]
    %v138 = vld [vmem:[#allocation5 + $0xc8] sm:$0xff]
    %v139 = vld [vmem:[#allocation5 + $0xd0] sm:$0xff]
    %v140 = vld [vmem:[#allocation5 + $0xd8] sm:$0xff]
    %v141 = vld [vmem:[#allocation5 + $0xe0] sm:$0xff]
    %v142 = vld [vmem:[#allocation5 + $0xe8] sm:$0xff]
    %v143 = vld [vmem:[#allocation5 + $0xf0] sm:$0xff]
    %v144 = vld [vmem:[#allocation5 + $0xf8] sm:$0xff]
    %v145 = vld [vmem:[#allocation7] sm:$0xf]
    %v147 = vlaneseq
    %v148 = vshrl.u32 %v147, 7
    %v149 = vsub.s32 0, %v148
    %v150 = vrot.slane %v145, %v149
    %v151 = vlaneseq
    %v152 = vshrl.u32 %v151, 7
    %v153 = vsub.s32 1, %v152
    %v154 = vrot.slane %v145, %v153
    %v155 = vlaneseq
    %v156 = vshrl.u32 %v155, 7
    %v157 = vsub.s32 2, %v156
    %v158 = vrot.slane %v145, %v157
    %v159 = vlaneseq
    %v160 = vshrl.u32 %v159, 7
    %v161 = vsub.s32 3, %v160
    %v162 = vrot.slane %v145, %v161
    %v199 = vunpack.c.l.b16 %v113
    %v200 = vunpack.c.h.b16 %v113
    %v201 = vunpack.c.l.b16 %v114
    %v202 = vunpack.c.h.b16 %v114
    %v203 = vunpack.c.l.b16 %v115
    %v204 = vunpack.c.h.b16 %v115
    %v205 = vunpack.c.l.b16 %v116
    %v206 = vunpack.c.h.b16 %v116
    %v207 = vunpack.c.l.b16 %v117
    %v208 = vunpack.c.h.b16 %v117
    %v209 = vunpack.c.l.b16 %v118
    %v210 = vunpack.c.h.b16 %v118
    %v211 = vunpack.c.l.b16 %v119
    %v212 = vunpack.c.h.b16 %v119
    %v213 = vunpack.c.l.b16 %v120
    %v214 = vunpack.c.h.b16 %v120
    %v215 = vunpack.c.l.b16 %v121
    %v216 = vunpack.c.h.b16 %v121
    %v217 = vunpack.c.l.b16 %v122
    %v218 = vunpack.c.h.b16 %v122
    %v219 = vunpack.c.l.b16 %v123
    %v220 = vunpack.c.h.b16 %v123
    %v221 = vunpack.c.l.b16 %v124
    %v222 = vunpack.c.h.b16 %v124
    %v223 = vunpack.c.l.b16 %v125
    %v224 = vunpack.c.h.b16 %v125
    %v225 = vunpack.c.l.b16 %v126
    %v226 = vunpack.c.h.b16 %v126
    %v227 = vunpack.c.l.b16 %v127
    %v228 = vunpack.c.h.b16 %v127
    %v229 = vunpack.c.l.b16 %v128
    %v230 = vunpack.c.h.b16 %v128
    %v231 = vunpack.c.l.b16 %v129
    %v232 = vunpack.c.h.b16 %v129
    %v233 = vunpack.c.l.b16 %v130
    %v234 = vunpack.c.h.b16 %v130
    %v235 = vunpack.c.l.b16 %v131
    %v236 = vunpack.c.h.b16 %v131
    %v237 = vunpack.c.l.b16 %v132
    %v238 = vunpack.c.h.b16 %v132
    %v239 = vunpack.c.l.b16 %v133
    %v240 = vunpack.c.h.b16 %v133
    %v241 = vunpack.c.l.b16 %v134
    %v242 = vunpack.c.h.b16 %v134
    %v243 = vunpack.c.l.b16 %v135
    %v244 = vunpack.c.h.b16 %v135
    %v245 = vunpack.c.l.b16 %v136
    %v246 = vunpack.c.h.b16 %v136
    %v247 = vunpack.c.l.b16 %v137
    %v248 = vunpack.c.h.b16 %v137
    %v249 = vunpack.c.l.b16 %v138
    %v250 = vunpack.c.h.b16 %v138
    %v251 = vunpack.c.l.b16 %v139
    %v252 = vunpack.c.h.b16 %v139
    %v253 = vunpack.c.l.b16 %v140
    %v254 = vunpack.c.h.b16 %v140
    %v255 = vunpack.c.l.b16 %v141
    %v256 = vunpack.c.h.b16 %v141
    %v257 = vunpack.c.l.b16 %v142
    %v258 = vunpack.c.h.b16 %v142
    %v259 = vunpack.c.l.b16 %v143
    %v260 = vunpack.c.h.b16 %v143
    %v261 = vunpack.c.l.b16 %v144
    %v262 = vunpack.c.h.b16 %v144
    %v263 = vpack.c.b16 %v203, %v199
    %v264 = vpack.c.b16 %v204, %v200
    %v265 = vpack.c.b16 %v205, %v201
    %v266 = vpack.c.b16 %v206, %v202
    %v267 = vpack.c.b16 %v211, %v207
    %v268 = vpack.c.b16 %v212, %v208
    %v269 = vpack.c.b16 %v213, %v209
    %v270 = vpack.c.b16 %v214, %v210
    %v271 = vpack.c.b16 %v219, %v215
    %v272 = vpack.c.b16 %v220, %v216
    %v273 = vpack.c.b16 %v221, %v217
    %v274 = vpack.c.b16 %v222, %v218
    %v275 = vpack.c.b16 %v227, %v223
    %v276 = vpack.c.b16 %v228, %v224
    %v277 = vpack.c.b16 %v229, %v225
    %v278 = vpack.c.b16 %v230, %v226
    %v279 = vpack.c.b16 %v235, %v231
    %v280 = vpack.c.b16 %v236, %v232
    %v281 = vpack.c.b16 %v237, %v233
    %v282 = vpack.c.b16 %v238, %v234
    %v283 = vpack.c.b16 %v243, %v239
    %v284 = vpack.c.b16 %v244, %v240
    %v285 = vpack.c.b16 %v245, %v241
    %v286 = vpack.c.b16 %v246, %v242
    %v287 = vpack.c.b16 %v251, %v247
    %v288 = vpack.c.b16 %v252, %v248
    %v289 = vpack.c.b16 %v253, %v249
    %v290 = vpack.c.b16 %v254, %v250
    %v291 = vpack.c.b16 %v259, %v255
    %v292 = vpack.c.b16 %v260, %v256
    %v293 = vpack.c.b16 %v261, %v257
    %v294 = vpack.c.b16 %v262, %v258
    %327 = vmatprep.subr.bf16.mxu0 %v292
    %328 = vmatpush1.bf16.msra.mxu0 %v291
    %329 = vmatprep.subr.bf16.mxu0 %v288
    %330 = vmatpush1.bf16.msra.mxu0 %v287
    %331 = vmatprep.subr.bf16.mxu0 %v284
    %332 = vmatpush1.bf16.msra.mxu0 %v283
    %333 = vmatprep.subr.bf16.mxu0 %v280
    %334 = vmatpush1.bf16.msra.mxu0 %v279
    %335 = vmatprep.subr.bf16.mxu0 %v276
    %336 = vmatpush1.bf16.msra.mxu0 %v275
    %337 = vmatprep.subr.bf16.mxu0 %v272
    %338 = vmatpush1.bf16.msra.mxu0 %v271
    %339 = vmatprep.subr.bf16.mxu0 %v268
    %340 = vmatpush1.bf16.msra.mxu0 %v267
    %341 = vmatprep.subr.bf16.mxu0 %v264
    %342 = vmatpush1.bf16.msra.mxu0 %v263
    %343 = vmatprep.subr.bf16.mxu0 0
    %344 = vmatpush2.bf16.msra.mxu0 0
    %345 = vmatprep.subr.bf16.mxu0 0
    %346 = vmatpush2.bf16.msra.mxu0 0
    %347 = vmatprep.subr.bf16.mxu0 0
    %348 = vmatpush2.bf16.msra.mxu0 0
    %349 = vmatprep.subr.bf16.mxu0 0
    %350 = vmatpush2.bf16.msra.mxu0 0
    %351 = vmatprep.subr.bf16.mxu0 0
    %352 = vmatpush2.bf16.msra.mxu0 0
    %353 = vmatprep.subr.bf16.mxu0 0
    %354 = vmatpush2.bf16.msra.mxu0 0
    %355 = vmatprep.subr.bf16.mxu0 0
    %356 = vmatpush2.bf16.msra.mxu0 0
    %357 = vmatprep.subr.bf16.mxu0 0
    %358 = vmatpush2.bf16.msra.mxu0 0
    %359 = vmatprep.mubr.bf16.mxu0 0
    %360 = vmatmul.mubr.bf16.gmra.mxu0 %v112
    %v361 = vpop.f32.mrf.mxu0
    %v362 = vadd.f32 %v150, %v361
    %v363 = vpop.f32.mrf.mxu0
    %v364 = vadd.f32 %v154, %v363
    %v365 = vpop.f32.mrf.mxu0
    %v366 = vpop.f32.mrf.mxu0
    %367 = vdwg.mxu0
    %368 = vmatprep.subr.bf16.mxu0 %v294
    %369 = vmatpush1.bf16.msra.mxu0 %v293
    %370 = vmatprep.subr.bf16.mxu0 %v290
    %371 = vmatpush1.bf16.msra.mxu0 %v289
    %372 = vmatprep.subr.bf16.mxu0 %v286
    %373 = vmatpush1.bf16.msra.mxu0 %v285
    %374 = vmatprep.subr.bf16.mxu0 %v282
    %375 = vmatpush1.bf16.msra.mxu0 %v281
    %376 = vmatprep.subr.bf16.mxu0 %v278
    %377 = vmatpush1.bf16.msra.mxu0 %v277
    %378 = vmatprep.subr.bf16.mxu0 %v274
    %379 = vmatpush1.bf16.msra.mxu0 %v273
    %380 = vmatprep.subr.bf16.mxu0 %v270
    %381 = vmatpush1.bf16.msra.mxu0 %v269
    %382 = vmatprep.subr.bf16.mxu0 %v266
    %383 = vmatpush1.bf16.msra.mxu0 %v265
    %384 = vmatprep.subr.bf16.mxu0 0
    %385 = vmatpush2.bf16.msra.mxu0 0
    %386 = vmatprep.subr.bf16.mxu0 0
    %387 = vmatpush2.bf16.msra.mxu0 0
    %388 = vmatprep.subr.bf16.mxu0 0
    %389 = vmatpush2.bf16.msra.mxu0 0
    %390 = vmatprep.subr.bf16.mxu0 0
    %391 = vmatpush2.bf16.msra.mxu0 0
    %392 = vmatprep.subr.bf16.mxu0 0
    %393 = vmatpush2.bf16.msra.mxu0 0
    %394 = vmatprep.subr.bf16.mxu0 0
    %395 = vmatpush2.bf16.msra.mxu0 0
    %396 = vmatprep.subr.bf16.mxu0 0
    %397 = vmatpush2.bf16.msra.mxu0 0
    %398 = vmatprep.subr.bf16.mxu0 0
    %399 = vmatpush2.bf16.msra.mxu0 0
    %400 = vmatprep.mubr.bf16.mxu0 0
    %401 = vmatmul.mubr.bf16.gmra.mxu0 %v112
    %v402 = vpop.f32.mrf.mxu0
    %v403 = vadd.f32 %v158, %v402
    %v404 = vpop.f32.mrf.mxu0
    %v405 = vadd.f32 %v162, %v404
    %v406 = vpop.f32.mrf.mxu0
    %v407 = vpop.f32.mrf.mxu0
    %408 = vdwg.mxu0
    %vm409 = vcmp.ge.f32.partialorder %v362, 0.0
    %vm410 = vcmp.ge.f32.partialorder %v364, 0.0
    %vm411 = vcmp.ge.f32.partialorder %v403, 0.0
    %vm412 = vcmp.ge.f32.partialorder %v405, 0.0
    %v413 = vmul.f32 %v362, 0.2
    %v414 = vmul.f32 %v364, 0.2
    %v415 = vmul.f32 %v403, 0.2
    %v416 = vmul.f32 %v405, 0.2
    %v417 = vsel %vm409, %v362, %v413
    %v418 = vsel %vm410, %v364, %v414
    %v419 = vsel %vm411, %v403, %v415
    %v420 = vsel %vm412, %v405, %v416
    %v421 = vpack.c.bf16 %v417, %v417
    %v422 = vpack.c.bf16 %v418, %v418
    %v423 = vpack.c.bf16 %v419, %v419
    %v424 = vpack.c.bf16 %v420, %v420
    %v425 = vld [vmem:[#allocation8] sm:$0xff]
    %v426 = vld [vmem:[#allocation8 + $0x8] sm:$0xff]
    %v427 = vld [vmem:[#allocation8 + $0x10] sm:$0xff]
    %v428 = vld [vmem:[#allocation8 + $0x18] sm:$0xff]
    %v429 = vld [vmem:[#allocation8 + $0x20] sm:$0xff]
    %v430 = vld [vmem:[#allocation8 + $0x28] sm:$0xff]
    %v431 = vld [vmem:[#allocation8 + $0x30] sm:$0xff]
    %v432 = vld [vmem:[#allocation8 + $0x38] sm:$0xff]
    %v433 = vld [vmem:[#allocation8 + $0x40] sm:$0xff]
    %v434 = vld [vmem:[#allocation8 + $0x48] sm:$0xff]
    %v435 = vld [vmem:[#allocation8 + $0x50] sm:$0xff]
    %v436 = vld [vmem:[#allocation8 + $0x58] sm:$0xff]
    %v437 = vld [vmem:[#allocation8 + $0x60] sm:$0xff]
    %v438 = vld [vmem:[#allocation8 + $0x68] sm:$0xff]
    %v439 = vld [vmem:[#allocation8 + $0x70] sm:$0xff]
    %v440 = vld [vmem:[#allocation8 + $0x78] sm:$0xff]
    %v441 = vld [vmem:[#allocation8 + $0x80] sm:$0xff]
    %v442 = vld [vmem:[#allocation8 + $0x88] sm:$0xff]
    %v443 = vld [vmem:[#allocation8 + $0x90] sm:$0xff]
    %v444 = vld [vmem:[#allocation8 + $0x98] sm:$0xff]
    %v445 = vld [vmem:[#allocation8 + $0xa0] sm:$0xff]
    %v446 = vld [vmem:[#allocation8 + $0xa8] sm:$0xff]
    %v447 = vld [vmem:[#allocation8 + $0xb0] sm:$0xff]
    %v448 = vld [vmem:[#allocation8 + $0xb8] sm:$0xff]
    %v449 = vld [vmem:[#allocation8 + $0xc0] sm:$0xff]
    %v450 = vld [vmem:[#allocation8 + $0xc8] sm:$0xff]
    %v451 = vld [vmem:[#allocation8 + $0xd0] sm:$0xff]
    %v452 = vld [vmem:[#allocation8 + $0xd8] sm:$0xff]
    %v453 = vld [vmem:[#allocation8 + $0xe0] sm:$0xff]
    %v454 = vld [vmem:[#allocation8 + $0xe8] sm:$0xff]
    %v455 = vld [vmem:[#allocation8 + $0xf0] sm:$0xff]
    %v456 = vld [vmem:[#allocation8 + $0xf8] sm:$0xff]
    %v457 = vld [vmem:[#allocation8 + $0x100] sm:$0xff]
    %v458 = vld [vmem:[#allocation8 + $0x108] sm:$0xff]
    %v459 = vld [vmem:[#allocation8 + $0x110] sm:$0xff]
    %v460 = vld [vmem:[#allocation8 + $0x118] sm:$0xff]
    %v461 = vld [vmem:[#allocation8 + $0x120] sm:$0xff]
    %v462 = vld [vmem:[#allocation8 + $0x128] sm:$0xff]
    %v463 = vld [vmem:[#allocation8 + $0x130] sm:$0xff]
    %v464 = vld [vmem:[#allocation8 + $0x138] sm:$0xff]
    %v465 = vld [vmem:[#allocation8 + $0x140] sm:$0xff]
    %v466 = vld [vmem:[#allocation8 + $0x148] sm:$0xff]
    %v467 = vld [vmem:[#allocation8 + $0x150] sm:$0xff]
    %v468 = vld [vmem:[#allocation8 + $0x158] sm:$0xff]
    %v469 = vld [vmem:[#allocation8 + $0x160] sm:$0xff]
    %v470 = vld [vmem:[#allocation8 + $0x168] sm:$0xff]
    %v471 = vld [vmem:[#allocation8 + $0x170] sm:$0xff]
    %v472 = vld [vmem:[#allocation8 + $0x178] sm:$0xff]
    %v473 = vld [vmem:[#allocation8 + $0x180] sm:$0xff]
    %v474 = vld [vmem:[#allocation8 + $0x188] sm:$0xff]
    %v475 = vld [vmem:[#allocation8 + $0x190] sm:$0xff]
    %v476 = vld [vmem:[#allocation8 + $0x198] sm:$0xff]
    %v477 = vld [vmem:[#allocation8 + $0x1a0] sm:$0xff]
    %v478 = vld [vmem:[#allocation8 + $0x1a8] sm:$0xff]
    %v479 = vld [vmem:[#allocation8 + $0x1b0] sm:$0xff]
    %v480 = vld [vmem:[#allocation8 + $0x1b8] sm:$0xff]
    %v481 = vld [vmem:[#allocation8 + $0x1c0] sm:$0xff]
    %v482 = vld [vmem:[#allocation8 + $0x1c8] sm:$0xff]
    %v483 = vld [vmem:[#allocation8 + $0x1d0] sm:$0xff]
    %v484 = vld [vmem:[#allocation8 + $0x1d8] sm:$0xff]
    %v485 = vld [vmem:[#allocation8 + $0x1e0] sm:$0xff]
    %v486 = vld [vmem:[#allocation8 + $0x1e8] sm:$0xff]
    %v487 = vld [vmem:[#allocation8 + $0x1f0] sm:$0xff]
    %v488 = vld [vmem:[#allocation8 + $0x1f8] sm:$0xff]
    %v489 = vld [vmem:[#allocation8 + $0x200] sm:$0xff]
    %v490 = vld [vmem:[#allocation8 + $0x208] sm:$0xff]
    %v491 = vld [vmem:[#allocation8 + $0x210] sm:$0xff]
    %v492 = vld [vmem:[#allocation8 + $0x218] sm:$0xff]
    %v493 = vld [vmem:[#allocation8 + $0x220] sm:$0xff]
    %v494 = vld [vmem:[#allocation8 + $0x228] sm:$0xff]
    %v495 = vld [vmem:[#allocation8 + $0x230] sm:$0xff]
    %v496 = vld [vmem:[#allocation8 + $0x238] sm:$0xff]
    %v497 = vld [vmem:[#allocation8 + $0x240] sm:$0xff]
    %v498 = vld [vmem:[#allocation8 + $0x248] sm:$0xff]
    %v499 = vld [vmem:[#allocation8 + $0x250] sm:$0xff]
    %v500 = vld [vmem:[#allocation8 + $0x258] sm:$0xff]
    %v501 = vld [vmem:[#allocation8 + $0x260] sm:$0xff]
    %v502 = vld [vmem:[#allocation8 + $0x268] sm:$0xff]
    %v503 = vld [vmem:[#allocation8 + $0x270] sm:$0xff]
    %v504 = vld [vmem:[#allocation8 + $0x278] sm:$0xff]
    %v505 = vld [vmem:[#allocation8 + $0x280] sm:$0xff]
    %v506 = vld [vmem:[#allocation8 + $0x288] sm:$0xff]
    %v507 = vld [vmem:[#allocation8 + $0x290] sm:$0xff]
    %v508 = vld [vmem:[#allocation8 + $0x298] sm:$0xff]
    %v509 = vld [vmem:[#allocation8 + $0x2a0] sm:$0xff]
    %v510 = vld [vmem:[#allocation8 + $0x2a8] sm:$0xff]
    %v511 = vld [vmem:[#allocation8 + $0x2b0] sm:$0xff]
    %v512 = vld [vmem:[#allocation8 + $0x2b8] sm:$0xff]
    %v513 = vld [vmem:[#allocation8 + $0x2c0] sm:$0xff]
    %v514 = vld [vmem:[#allocation8 + $0x2c8] sm:$0xff]
    %v515 = vld [vmem:[#allocation8 + $0x2d0] sm:$0xff]
    %v516 = vld [vmem:[#allocation8 + $0x2d8] sm:$0xff]
    %v517 = vld [vmem:[#allocation8 + $0x2e0] sm:$0xff]
    %v518 = vld [vmem:[#allocation8 + $0x2e8] sm:$0xff]
    %v519 = vld [vmem:[#allocation8 + $0x2f0] sm:$0xff]
    %v520 = vld [vmem:[#allocation8 + $0x2f8] sm:$0xff]
    %v521 = vld [vmem:[#allocation8 + $0x300] sm:$0xff]
    %v522 = vld [vmem:[#allocation8 + $0x308] sm:$0xff]
    %v523 = vld [vmem:[#allocation8 + $0x310] sm:$0xff]
    %v524 = vld [vmem:[#allocation8 + $0x318] sm:$0xff]
    %v525 = vld [vmem:[#allocation8 + $0x320] sm:$0xff]
    %v526 = vld [vmem:[#allocation8 + $0x328] sm:$0xff]
    %v527 = vld [vmem:[#allocation8 + $0x330] sm:$0xff]
    %v528 = vld [vmem:[#allocation8 + $0x338] sm:$0xff]
    %v529 = vld [vmem:[#allocation8 + $0x340] sm:$0xff]
    %v530 = vld [vmem:[#allocation8 + $0x348] sm:$0xff]
    %v531 = vld [vmem:[#allocation8 + $0x350] sm:$0xff]
    %v532 = vld [vmem:[#allocation8 + $0x358] sm:$0xff]
    %v533 = vld [vmem:[#allocation8 + $0x360] sm:$0xff]
    %v534 = vld [vmem:[#allocation8 + $0x368] sm:$0xff]
    %v535 = vld [vmem:[#allocation8 + $0x370] sm:$0xff]
    %v536 = vld [vmem:[#allocation8 + $0x378] sm:$0xff]
    %v537 = vld [vmem:[#allocation8 + $0x380] sm:$0xff]
    %v538 = vld [vmem:[#allocation8 + $0x388] sm:$0xff]
    %v539 = vld [vmem:[#allocation8 + $0x390] sm:$0xff]
    %v540 = vld [vmem:[#allocation8 + $0x398] sm:$0xff]
    %v541 = vld [vmem:[#allocation8 + $0x3a0] sm:$0xff]
    %v542 = vld [vmem:[#allocation8 + $0x3a8] sm:$0xff]
    %v543 = vld [vmem:[#allocation8 + $0x3b0] sm:$0xff]
    %v544 = vld [vmem:[#allocation8 + $0x3b8] sm:$0xff]
    %v545 = vld [vmem:[#allocation8 + $0x3c0] sm:$0xff]
    %v546 = vld [vmem:[#allocation8 + $0x3c8] sm:$0xff]
    %v547 = vld [vmem:[#allocation8 + $0x3d0] sm:$0xff]
    %v548 = vld [vmem:[#allocation8 + $0x3d8] sm:$0xff]
    %v549 = vld [vmem:[#allocation8 + $0x3e0] sm:$0xff]
    %v550 = vld [vmem:[#allocation8 + $0x3e8] sm:$0xff]
    %v551 = vld [vmem:[#allocation8 + $0x3f0] sm:$0xff]
    %v552 = vld [vmem:[#allocation8 + $0x3f8] sm:$0xff]
    %v553 = vld [vmem:[%s4] sm:$0xf]
    %v555 = vlaneseq
    %v556 = vshrl.u32 %v555, 7
    %v557 = vsub.s32 0, %v556
    %v558 = vrot.slane %v553, %v557
    %v559 = vlaneseq
    %v560 = vshrl.u32 %v559, 7
    %v561 = vsub.s32 1, %v560
    %v562 = vrot.slane %v553, %v561
    %v563 = vlaneseq
    %v564 = vshrl.u32 %v563, 7
    %v565 = vsub.s32 2, %v564
    %v566 = vrot.slane %v553, %v565
    %v567 = vlaneseq
    %v568 = vshrl.u32 %v567, 7
    %v569 = vsub.s32 3, %v568
    %v570 = vrot.slane %v553, %v569
    %v703 = vunpack.c.l.b16 %v425
    %v704 = vunpack.c.h.b16 %v425
    %v705 = vunpack.c.l.b16 %v426
    %v706 = vunpack.c.h.b16 %v426
    %v707 = vunpack.c.l.b16 %v427
    %v708 = vunpack.c.h.b16 %v427
    %v709 = vunpack.c.l.b16 %v428
    %v710 = vunpack.c.h.b16 %v428
    %v711 = vunpack.c.l.b16 %v429
    %v712 = vunpack.c.h.b16 %v429
    %v713 = vunpack.c.l.b16 %v430
    %v714 = vunpack.c.h.b16 %v430
    %v715 = vunpack.c.l.b16 %v431
    %v716 = vunpack.c.h.b16 %v431
    %v717 = vunpack.c.l.b16 %v432
    %v718 = vunpack.c.h.b16 %v432
    %v719 = vunpack.c.l.b16 %v433
    %v720 = vunpack.c.h.b16 %v433
    %v721 = vunpack.c.l.b16 %v434
    %v722 = vunpack.c.h.b16 %v434
    %v723 = vunpack.c.l.b16 %v435
    %v724 = vunpack.c.h.b16 %v435
    %v725 = vunpack.c.l.b16 %v436
    %v726 = vunpack.c.h.b16 %v436
    %v727 = vunpack.c.l.b16 %v437
    %v728 = vunpack.c.h.b16 %v437
    %v729 = vunpack.c.l.b16 %v438
    %v730 = vunpack.c.h.b16 %v438
    %v731 = vunpack.c.l.b16 %v439
    %v732 = vunpack.c.h.b16 %v439
    %v733 = vunpack.c.l.b16 %v440
    %v734 = vunpack.c.h.b16 %v440
    %v735 = vunpack.c.l.b16 %v441
    %v736 = vunpack.c.h.b16 %v441
    %v737 = vunpack.c.l.b16 %v442
    %v738 = vunpack.c.h.b16 %v442
    %v739 = vunpack.c.l.b16 %v443
    %v740 = vunpack.c.h.b16 %v443
    %v741 = vunpack.c.l.b16 %v444
    %v742 = vunpack.c.h.b16 %v444
    %v743 = vunpack.c.l.b16 %v445
    %v744 = vunpack.c.h.b16 %v445
    %v745 = vunpack.c.l.b16 %v446
    %v746 = vunpack.c.h.b16 %v446
    %v747 = vunpack.c.l.b16 %v447
    %v748 = vunpack.c.h.b16 %v447
    %v749 = vunpack.c.l.b16 %v448
    %v750 = vunpack.c.h.b16 %v448
    %v751 = vunpack.c.l.b16 %v449
    %v752 = vunpack.c.h.b16 %v449
    %v753 = vunpack.c.l.b16 %v450
    %v754 = vunpack.c.h.b16 %v450
    %v755 = vunpack.c.l.b16 %v451
    %v756 = vunpack.c.h.b16 %v451
    %v757 = vunpack.c.l.b16 %v452
    %v758 = vunpack.c.h.b16 %v452
    %v759 = vunpack.c.l.b16 %v453
    %v760 = vunpack.c.h.b16 %v453
    %v761 = vunpack.c.l.b16 %v454
    %v762 = vunpack.c.h.b16 %v454
    %v763 = vunpack.c.l.b16 %v455
    %v764 = vunpack.c.h.b16 %v455
    %v765 = vunpack.c.l.b16 %v456
    %v766 = vunpack.c.h.b16 %v456
    %v767 = vunpack.c.l.b16 %v457
    %v768 = vunpack.c.h.b16 %v457
    %v769 = vunpack.c.l.b16 %v458
    %v770 = vunpack.c.h.b16 %v458
    %v771 = vunpack.c.l.b16 %v459
    %v772 = vunpack.c.h.b16 %v459
    %v773 = vunpack.c.l.b16 %v460
    %v774 = vunpack.c.h.b16 %v460
    %v775 = vunpack.c.l.b16 %v461
    %v776 = vunpack.c.h.b16 %v461
    %v777 = vunpack.c.l.b16 %v462
    %v778 = vunpack.c.h.b16 %v462
    %v779 = vunpack.c.l.b16 %v463
    %v780 = vunpack.c.h.b16 %v463
    %v781 = vunpack.c.l.b16 %v464
    %v782 = vunpack.c.h.b16 %v464
    %v783 = vunpack.c.l.b16 %v465
    %v784 = vunpack.c.h.b16 %v465
    %v785 = vunpack.c.l.b16 %v466
    %v786 = vunpack.c.h.b16 %v466
    %v787 = vunpack.c.l.b16 %v467
    %v788 = vunpack.c.h.b16 %v467
    %v789 = vunpack.c.l.b16 %v468
    %v790 = vunpack.c.h.b16 %v468
    %v791 = vunpack.c.l.b16 %v469
    %v792 = vunpack.c.h.b16 %v469
    %v793 = vunpack.c.l.b16 %v470
    %v794 = vunpack.c.h.b16 %v470
    %v795 = vunpack.c.l.b16 %v471
    %v796 = vunpack.c.h.b16 %v471
    %v797 = vunpack.c.l.b16 %v472
    %v798 = vunpack.c.h.b16 %v472
    %v799 = vunpack.c.l.b16 %v473
    %v800 = vunpack.c.h.b16 %v473
    %v801 = vunpack.c.l.b16 %v474
    %v802 = vunpack.c.h.b16 %v474
    %v803 = vunpack.c.l.b16 %v475
    %v804 = vunpack.c.h.b16 %v475
    %v805 = vunpack.c.l.b16 %v476
    %v806 = vunpack.c.h.b16 %v476
    %v807 = vunpack.c.l.b16 %v477
    %v808 = vunpack.c.h.b16 %v477
    %v809 = vunpack.c.l.b16 %v478
    %v810 = vunpack.c.h.b16 %v478
    %v811 = vunpack.c.l.b16 %v479
    %v812 = vunpack.c.h.b16 %v479
    %v813 = vunpack.c.l.b16 %v480
    %v814 = vunpack.c.h.b16 %v480
    %v815 = vunpack.c.l.b16 %v481
    %v816 = vunpack.c.h.b16 %v481
    %v817 = vunpack.c.l.b16 %v482
    %v818 = vunpack.c.h.b16 %v482
    %v819 = vunpack.c.l.b16 %v483
    %v820 = vunpack.c.h.b16 %v483
    %v821 = vunpack.c.l.b16 %v484
    %v822 = vunpack.c.h.b16 %v484
    %v823 = vunpack.c.l.b16 %v485
    %v824 = vunpack.c.h.b16 %v485
    %v825 = vunpack.c.l.b16 %v486
    %v826 = vunpack.c.h.b16 %v486
    %v827 = vunpack.c.l.b16 %v487
    %v828 = vunpack.c.h.b16 %v487
    %v829 = vunpack.c.l.b16 %v488
    %v830 = vunpack.c.h.b16 %v488
    %v831 = vunpack.c.l.b16 %v489
    %v832 = vunpack.c.h.b16 %v489
    %v833 = vunpack.c.l.b16 %v490
    %v834 = vunpack.c.h.b16 %v490
    %v835 = vunpack.c.l.b16 %v491
    %v836 = vunpack.c.h.b16 %v491
    %v837 = vunpack.c.l.b16 %v492
    %v838 = vunpack.c.h.b16 %v492
    %v839 = vunpack.c.l.b16 %v493
    %v840 = vunpack.c.h.b16 %v493
    %v841 = vunpack.c.l.b16 %v494
    %v842 = vunpack.c.h.b16 %v494
    %v843 = vunpack.c.l.b16 %v495
    %v844 = vunpack.c.h.b16 %v495
    %v845 = vunpack.c.l.b16 %v496
    %v846 = vunpack.c.h.b16 %v496
    %v847 = vunpack.c.l.b16 %v497
    %v848 = vunpack.c.h.b16 %v497
    %v849 = vunpack.c.l.b16 %v498
    %v850 = vunpack.c.h.b16 %v498
    %v851 = vunpack.c.l.b16 %v499
    %v852 = vunpack.c.h.b16 %v499
    %v853 = vunpack.c.l.b16 %v500
    %v854 = vunpack.c.h.b16 %v500
    %v855 = vunpack.c.l.b16 %v501
    %v856 = vunpack.c.h.b16 %v501
    %v857 = vunpack.c.l.b16 %v502
    %v858 = vunpack.c.h.b16 %v502
    %v859 = vunpack.c.l.b16 %v503
    %v860 = vunpack.c.h.b16 %v503
    %v861 = vunpack.c.l.b16 %v504
    %v862 = vunpack.c.h.b16 %v504
    %v863 = vunpack.c.l.b16 %v505
    %v864 = vunpack.c.h.b16 %v505
    %v865 = vunpack.c.l.b16 %v506
    %v866 = vunpack.c.h.b16 %v506
    %v867 = vunpack.c.l.b16 %v507
    %v868 = vunpack.c.h.b16 %v507
    %v869 = vunpack.c.l.b16 %v508
    %v870 = vunpack.c.h.b16 %v508
    %v871 = vunpack.c.l.b16 %v509
    %v872 = vunpack.c.h.b16 %v509
    %v873 = vunpack.c.l.b16 %v510
    %v874 = vunpack.c.h.b16 %v510
    %v875 = vunpack.c.l.b16 %v511
    %v876 = vunpack.c.h.b16 %v511
    %v877 = vunpack.c.l.b16 %v512
    %v878 = vunpack.c.h.b16 %v512
    %v879 = vunpack.c.l.b16 %v513
    %v880 = vunpack.c.h.b16 %v513
    %v881 = vunpack.c.l.b16 %v514
    %v882 = vunpack.c.h.b16 %v514
    %v883 = vunpack.c.l.b16 %v515
    %v884 = vunpack.c.h.b16 %v515
    %v885 = vunpack.c.l.b16 %v516
    %v886 = vunpack.c.h.b16 %v516
    %v887 = vunpack.c.l.b16 %v517
    %v888 = vunpack.c.h.b16 %v517
    %v889 = vunpack.c.l.b16 %v518
    %v890 = vunpack.c.h.b16 %v518
    %v891 = vunpack.c.l.b16 %v519
    %v892 = vunpack.c.h.b16 %v519
    %v893 = vunpack.c.l.b16 %v520
    %v894 = vunpack.c.h.b16 %v520
    %v895 = vunpack.c.l.b16 %v521
    %v896 = vunpack.c.h.b16 %v521
    %v897 = vunpack.c.l.b16 %v522
    %v898 = vunpack.c.h.b16 %v522
    %v899 = vunpack.c.l.b16 %v523
    %v900 = vunpack.c.h.b16 %v523
    %v901 = vunpack.c.l.b16 %v524
    %v902 = vunpack.c.h.b16 %v524
    %v903 = vunpack.c.l.b16 %v525
    %v904 = vunpack.c.h.b16 %v525
    %v905 = vunpack.c.l.b16 %v526
    %v906 = vunpack.c.h.b16 %v526
    %v907 = vunpack.c.l.b16 %v527
    %v908 = vunpack.c.h.b16 %v527
    %v909 = vunpack.c.l.b16 %v528
    %v910 = vunpack.c.h.b16 %v528
    %v911 = vunpack.c.l.b16 %v529
    %v912 = vunpack.c.h.b16 %v529
    %v913 = vunpack.c.l.b16 %v530
    %v914 = vunpack.c.h.b16 %v530
    %v915 = vunpack.c.l.b16 %v531
    %v916 = vunpack.c.h.b16 %v531
    %v917 = vunpack.c.l.b16 %v532
    %v918 = vunpack.c.h.b16 %v532
    %v919 = vunpack.c.l.b16 %v533
    %v920 = vunpack.c.h.b16 %v533
    %v921 = vunpack.c.l.b16 %v534
    %v922 = vunpack.c.h.b16 %v534
    %v923 = vunpack.c.l.b16 %v535
    %v924 = vunpack.c.h.b16 %v535
    %v925 = vunpack.c.l.b16 %v536
    %v926 = vunpack.c.h.b16 %v536
    %v927 = vunpack.c.l.b16 %v537
    %v928 = vunpack.c.h.b16 %v537
    %v929 = vunpack.c.l.b16 %v538
    %v930 = vunpack.c.h.b16 %v538
    %v931 = vunpack.c.l.b16 %v539
    %v932 = vunpack.c.h.b16 %v539
    %v933 = vunpack.c.l.b16 %v540
    %v934 = vunpack.c.h.b16 %v540
    %v935 = vunpack.c.l.b16 %v541
    %v936 = vunpack.c.h.b16 %v541
    %v937 = vunpack.c.l.b16 %v542
    %v938 = vunpack.c.h.b16 %v542
    %v939 = vunpack.c.l.b16 %v543
    %v940 = vunpack.c.h.b16 %v543
    %v941 = vunpack.c.l.b16 %v544
    %v942 = vunpack.c.h.b16 %v544
    %v943 = vunpack.c.l.b16 %v545
    %v944 = vunpack.c.h.b16 %v545
    %v945 = vunpack.c.l.b16 %v546
    %v946 = vunpack.c.h.b16 %v546
    %v947 = vunpack.c.l.b16 %v547
    %v948 = vunpack.c.h.b16 %v547
    %v949 = vunpack.c.l.b16 %v548
    %v950 = vunpack.c.h.b16 %v548
    %v951 = vunpack.c.l.b16 %v549
    %v952 = vunpack.c.h.b16 %v549
    %v953 = vunpack.c.l.b16 %v550
    %v954 = vunpack.c.h.b16 %v550
    %v955 = vunpack.c.l.b16 %v551
    %v956 = vunpack.c.h.b16 %v551
    %v957 = vunpack.c.l.b16 %v552
    %v958 = vunpack.c.h.b16 %v552
    %v959 = vpack.c.b16 %v707, %v703
    %v960 = vpack.c.b16 %v708, %v704
    %v961 = vpack.c.b16 %v709, %v705
    %v962 = vpack.c.b16 %v710, %v706
    %v963 = vpack.c.b16 %v715, %v711
    %v964 = vpack.c.b16 %v716, %v712
    %v965 = vpack.c.b16 %v717, %v713
    %v966 = vpack.c.b16 %v718, %v714
    %v967 = vpack.c.b16 %v723, %v719
    %v968 = vpack.c.b16 %v724, %v720
    %v969 = vpack.c.b16 %v725, %v721
    %v970 = vpack.c.b16 %v726, %v722
    %v971 = vpack.c.b16 %v731, %v727
    %v972 = vpack.c.b16 %v732, %v728
    %v973 = vpack.c.b16 %v733, %v729
    %v974 = vpack.c.b16 %v734, %v730
    %v975 = vpack.c.b16 %v739, %v735
    %v976 = vpack.c.b16 %v740, %v736
    %v977 = vpack.c.b16 %v741, %v737
    %v978 = vpack.c.b16 %v742, %v738
    %v979 = vpack.c.b16 %v747, %v743
    %v980 = vpack.c.b16 %v748, %v744
    %v981 = vpack.c.b16 %v749, %v745
    %v982 = vpack.c.b16 %v750, %v746
    %v983 = vpack.c.b16 %v755, %v751
    %v984 = vpack.c.b16 %v756, %v752
    %v985 = vpack.c.b16 %v757, %v753
    %v986 = vpack.c.b16 %v758, %v754
    %v987 = vpack.c.b16 %v763, %v759
    %v988 = vpack.c.b16 %v764, %v760
    %v989 = vpack.c.b16 %v765, %v761
    %v990 = vpack.c.b16 %v766, %v762
    %v991 = vpack.c.b16 %v771, %v767
    %v992 = vpack.c.b16 %v772, %v768
    %v993 = vpack.c.b16 %v773, %v769
    %v994 = vpack.c.b16 %v774, %v770
    %v995 = vpack.c.b16 %v779, %v775
    %v996 = vpack.c.b16 %v780, %v776
    %v997 = vpack.c.b16 %v781, %v777
    %v998 = vpack.c.b16 %v782, %v778
    %v999 = vpack.c.b16 %v787, %v783
    %v1000 = vpack.c.b16 %v788, %v784
    %v1001 = vpack.c.b16 %v789, %v785
    %v1002 = vpack.c.b16 %v790, %v786
    %v1003 = vpack.c.b16 %v795, %v791
    %v1004 = vpack.c.b16 %v796, %v792
    %v1005 = vpack.c.b16 %v797, %v793
    %v1006 = vpack.c.b16 %v798, %v794
    %v1007 = vpack.c.b16 %v803, %v799
    %v1008 = vpack.c.b16 %v804, %v800
    %v1009 = vpack.c.b16 %v805, %v801
    %v1010 = vpack.c.b16 %v806, %v802
    %v1011 = vpack.c.b16 %v811, %v807
    %v1012 = vpack.c.b16 %v812, %v808
    %v1013 = vpack.c.b16 %v813, %v809
    %v1014 = vpack.c.b16 %v814, %v810
    %v1015 = vpack.c.b16 %v819, %v815
    %v1016 = vpack.c.b16 %v820, %v816
    %v1017 = vpack.c.b16 %v821, %v817
    %v1018 = vpack.c.b16 %v822, %v818
    %v1019 = vpack.c.b16 %v827, %v823
    %v1020 = vpack.c.b16 %v828, %v824
    %v1021 = vpack.c.b16 %v829, %v825
    %v1022 = vpack.c.b16 %v830, %v826
    %v1023 = vpack.c.b16 %v835, %v831
    %v1024 = vpack.c.b16 %v836, %v832
    %v1025 = vpack.c.b16 %v837, %v833
    %v1026 = vpack.c.b16 %v838, %v834
    %v1027 = vpack.c.b16 %v843, %v839
    %v1028 = vpack.c.b16 %v844, %v840
    %v1029 = vpack.c.b16 %v845, %v841
    %v1030 = vpack.c.b16 %v846, %v842
    %v1031 = vpack.c.b16 %v851, %v847
    %v1032 = vpack.c.b16 %v852, %v848
    %v1033 = vpack.c.b16 %v853, %v849
    %v1034 = vpack.c.b16 %v854, %v850
    %v1035 = vpack.c.b16 %v859, %v855
    %v1036 = vpack.c.b16 %v860, %v856
    %v1037 = vpack.c.b16 %v861, %v857
    %v1038 = vpack.c.b16 %v862, %v858
    %v1039 = vpack.c.b16 %v867, %v863
    %v1040 = vpack.c.b16 %v868, %v864
    %v1041 = vpack.c.b16 %v869, %v865
    %v1042 = vpack.c.b16 %v870, %v866
    %v1043 = vpack.c.b16 %v875, %v871
    %v1044 = vpack.c.b16 %v876, %v872
    %v1045 = vpack.c.b16 %v877, %v873
    %v1046 = vpack.c.b16 %v878, %v874
    %v1047 = vpack.c.b16 %v883, %v879
    %v1048 = vpack.c.b16 %v884, %v880
    %v1049 = vpack.c.b16 %v885, %v881
    %v1050 = vpack.c.b16 %v886, %v882
    %v1051 = vpack.c.b16 %v891, %v887
    %v1052 = vpack.c.b16 %v892, %v888
    %v1053 = vpack.c.b16 %v893, %v889
    %v1054 = vpack.c.b16 %v894, %v890
    %v1055 = vpack.c.b16 %v899, %v895
    %v1056 = vpack.c.b16 %v900, %v896
    %v1057 = vpack.c.b16 %v901, %v897
    %v1058 = vpack.c.b16 %v902, %v898
    %v1059 = vpack.c.b16 %v907, %v903
    %v1060 = vpack.c.b16 %v908, %v904
    %v1061 = vpack.c.b16 %v909, %v905
    %v1062 = vpack.c.b16 %v910, %v906
    %v1063 = vpack.c.b16 %v915, %v911
    %v1064 = vpack.c.b16 %v916, %v912
    %v1065 = vpack.c.b16 %v917, %v913
    %v1066 = vpack.c.b16 %v918, %v914
    %v1067 = vpack.c.b16 %v923, %v919
    %v1068 = vpack.c.b16 %v924, %v920
    %v1069 = vpack.c.b16 %v925, %v921
    %v1070 = vpack.c.b16 %v926, %v922
    %v1071 = vpack.c.b16 %v931, %v927
    %v1072 = vpack.c.b16 %v932, %v928
    %v1073 = vpack.c.b16 %v933, %v929
    %v1074 = vpack.c.b16 %v934, %v930
    %v1075 = vpack.c.b16 %v939, %v935
    %v1076 = vpack.c.b16 %v940, %v936
    %v1077 = vpack.c.b16 %v941, %v937
    %v1078 = vpack.c.b16 %v942, %v938
    %v1079 = vpack.c.b16 %v947, %v943
    %v1080 = vpack.c.b16 %v948, %v944
    %v1081 = vpack.c.b16 %v949, %v945
    %v1082 = vpack.c.b16 %v950, %v946
    %v1083 = vpack.c.b16 %v955, %v951
    %v1084 = vpack.c.b16 %v956, %v952
    %v1085 = vpack.c.b16 %v957, %v953
    %v1086 = vpack.c.b16 %v958, %v954
    %1215 = vmatprep.subr.bf16.mxu0 %v988
    %1216 = vmatpush1.bf16.msra.mxu0 %v987
    %1217 = vmatprep.subr.bf16.mxu0 %v984
    %1218 = vmatpush1.bf16.msra.mxu0 %v983
    %1219 = vmatprep.subr.bf16.mxu0 %v980
    %1220 = vmatpush1.bf16.msra.mxu0 %v979
    %1221 = vmatprep.subr.bf16.mxu0 %v976
    %1222 = vmatpush1.bf16.msra.mxu0 %v975
    %1223 = vmatprep.subr.bf16.mxu0 %v972
    %1224 = vmatpush1.bf16.msra.mxu0 %v971
    %1225 = vmatprep.subr.bf16.mxu0 %v968
    %1226 = vmatpush1.bf16.msra.mxu0 %v967
    %1227 = vmatprep.subr.bf16.mxu0 %v964
    %1228 = vmatpush1.bf16.msra.mxu0 %v963
    %1229 = vmatprep.subr.bf16.mxu0 %v960
    %1230 = vmatpush1.bf16.msra.mxu0 %v959
    %1231 = vmatprep.subr.bf16.mxu0 %v1020
    %1232 = vmatpush2.bf16.msra.mxu0 %v1019
    %1233 = vmatprep.subr.bf16.mxu0 %v1016
    %1234 = vmatpush2.bf16.msra.mxu0 %v1015
    %1235 = vmatprep.subr.bf16.mxu0 %v1012
    %1236 = vmatpush2.bf16.msra.mxu0 %v1011
    %1237 = vmatprep.subr.bf16.mxu0 %v1008
    %1238 = vmatpush2.bf16.msra.mxu0 %v1007
    %1239 = vmatprep.subr.bf16.mxu0 %v1004
    %1240 = vmatpush2.bf16.msra.mxu0 %v1003
    %1241 = vmatprep.subr.bf16.mxu0 %v1000
    %1242 = vmatpush2.bf16.msra.mxu0 %v999
    %1243 = vmatprep.subr.bf16.mxu0 %v996
    %1244 = vmatpush2.bf16.msra.mxu0 %v995
    %1245 = vmatprep.subr.bf16.mxu0 %v992
    %1246 = vmatpush2.bf16.msra.mxu0 %v991
    %1247 = vmatprep.mubr.bf16.mxu0 %v422
    %1248 = vmatmul.mubr.bf16.gmra.mxu0 %v421
    %v1249 = vpop.f32.mrf.mxu0
    %v1250 = vadd.f32 %v558, %v1249
    %v1251 = vpop.f32.mrf.mxu0
    %v1252 = vadd.f32 %v562, %v1251
    %v1253 = vpop.f32.mrf.mxu0
    %v1254 = vpop.f32.mrf.mxu0
    %1255 = vdwg.mxu0
    %1256 = vmatprep.subr.bf16.mxu0 %v1052
    %1257 = vmatpush1.bf16.msra.mxu0 %v1051
    %1258 = vmatprep.subr.bf16.mxu0 %v1048
    %1259 = vmatpush1.bf16.msra.mxu0 %v1047
    %1260 = vmatprep.subr.bf16.mxu0 %v1044
    %1261 = vmatpush1.bf16.msra.mxu0 %v1043
    %1262 = vmatprep.subr.bf16.mxu0 %v1040
    %1263 = vmatpush1.bf16.msra.mxu0 %v1039
    %1264 = vmatprep.subr.bf16.mxu0 %v1036
    %1265 = vmatpush1.bf16.msra.mxu0 %v1035
    %1266 = vmatprep.subr.bf16.mxu0 %v1032
    %1267 = vmatpush1.bf16.msra.mxu0 %v1031
    %1268 = vmatprep.subr.bf16.mxu0 %v1028
    %1269 = vmatpush1.bf16.msra.mxu0 %v1027
    %1270 = vmatprep.subr.bf16.mxu0 %v1024
    %1271 = vmatpush1.bf16.msra.mxu0 %v1023
    %1272 = vmatprep.subr.bf16.mxu0 %v1084
    %1273 = vmatpush2.bf16.msra.mxu0 %v1083
    %1274 = vmatprep.subr.bf16.mxu0 %v1080
    %1275 = vmatpush2.bf16.msra.mxu0 %v1079
    %1276 = vmatprep.subr.bf16.mxu0 %v1076
    %1277 = vmatpush2.bf16.msra.mxu0 %v1075
    %1278 = vmatprep.subr.bf16.mxu0 %v1072
    %1279 = vmatpush2.bf16.msra.mxu0 %v1071
    %1280 = vmatprep.subr.bf16.mxu0 %v1068
    %1281 = vmatpush2.bf16.msra.mxu0 %v1067
    %1282 = vmatprep.subr.bf16.mxu0 %v1064
    %1283 = vmatpush2.bf16.msra.mxu0 %v1063
    %1284 = vmatprep.subr.bf16.mxu0 %v1060
    %1285 = vmatpush2.bf16.msra.mxu0 %v1059
    %1286 = vmatprep.subr.bf16.mxu0 %v1056
    %1287 = vmatpush2.bf16.msra.mxu0 %v1055
    %1288 = vmatprep.mubr.bf16.mxu0 %v424
    %1289 = vmatmul.mubr.bf16.gmra.mxu0 %v423
    %v1290 = vpop.f32.mrf.mxu0
    %v1291 = vadd.f32 %v1250, %v1290
    %v1292 = vpop.f32.mrf.mxu0
    %v1293 = vadd.f32 %v1252, %v1292
    %v1294 = vpop.f32.mrf.mxu0
    %v1295 = vpop.f32.mrf.mxu0
    %1296 = vdwg.mxu0
    %1297 = vmatprep.subr.bf16.mxu0 %v990
    %1298 = vmatpush1.bf16.msra.mxu0 %v989
    %1299 = vmatprep.subr.bf16.mxu0 %v986
    %1300 = vmatpush1.bf16.msra.mxu0 %v985
    %1301 = vmatprep.subr.bf16.mxu0 %v982
    %1302 = vmatpush1.bf16.msra.mxu0 %v981
    %1303 = vmatprep.subr.bf16.mxu0 %v978
    %1304 = vmatpush1.bf16.msra.mxu0 %v977
    %1305 = vmatprep.subr.bf16.mxu0 %v974
    %1306 = vmatpush1.bf16.msra.mxu0 %v973
    %1307 = vmatprep.subr.bf16.mxu0 %v970
    %1308 = vmatpush1.bf16.msra.mxu0 %v969
    %1309 = vmatprep.subr.bf16.mxu0 %v966
    %1310 = vmatpush1.bf16.msra.mxu0 %v965
    %1311 = vmatprep.subr.bf16.mxu0 %v962
    %1312 = vmatpush1.bf16.msra.mxu0 %v961
    %1313 = vmatprep.subr.bf16.mxu0 %v1022
    %1314 = vmatpush2.bf16.msra.mxu0 %v1021
    %1315 = vmatprep.subr.bf16.mxu0 %v1018
    %1316 = vmatpush2.bf16.msra.mxu0 %v1017
    %1317 = vmatprep.subr.bf16.mxu0 %v1014
    %1318 = vmatpush2.bf16.msra.mxu0 %v1013
    %1319 = vmatprep.subr.bf16.mxu0 %v1010
    %1320 = vmatpush2.bf16.msra.mxu0 %v1009
    %1321 = vmatprep.subr.bf16.mxu0 %v1006
    %1322 = vmatpush2.bf16.msra.mxu0 %v1005
    %1323 = vmatprep.subr.bf16.mxu0 %v1002
    %1324 = vmatpush2.bf16.msra.mxu0 %v1001
    %1325 = vmatprep.subr.bf16.mxu0 %v998
    %1326 = vmatpush2.bf16.msra.mxu0 %v997
    %1327 = vmatprep.subr.bf16.mxu0 %v994
    %1328 = vmatpush2.bf16.msra.mxu0 %v993
    %1329 = vmatprep.mubr.bf16.mxu0 %v422
    %1330 = vmatmul.mubr.bf16.gmra.mxu0 %v421
    %v1331 = vpop.f32.mrf.mxu0
    %v1332 = vadd.f32 %v566, %v1331
    %v1333 = vpop.f32.mrf.mxu0
    %v1334 = vadd.f32 %v570, %v1333
    %v1335 = vpop.f32.mrf.mxu0
    %v1336 = vpop.f32.mrf.mxu0
    %1337 = vdwg.mxu0
    %1338 = vmatprep.subr.bf16.mxu0 %v1054
    %1339 = vmatpush1.bf16.msra.mxu0 %v1053
    %1340 = vmatprep.subr.bf16.mxu0 %v1050
    %1341 = vmatpush1.bf16.msra.mxu0 %v1049
    %1342 = vmatprep.subr.bf16.mxu0 %v1046
    %1343 = vmatpush1.bf16.msra.mxu0 %v1045
    %1344 = vmatprep.subr.bf16.mxu0 %v1042
    %1345 = vmatpush1.bf16.msra.mxu0 %v1041
    %1346 = vmatprep.subr.bf16.mxu0 %v1038
    %1347 = vmatpush1.bf16.msra.mxu0 %v1037
    %1348 = vmatprep.subr.bf16.mxu0 %v1034
    %1349 = vmatpush1.bf16.msra.mxu0 %v1033
    %1350 = vmatprep.subr.bf16.mxu0 %v1030
    %1351 = vmatpush1.bf16.msra.mxu0 %v1029
    %1352 = vmatprep.subr.bf16.mxu0 %v1026
    %1353 = vmatpush1.bf16.msra.mxu0 %v1025
    %1354 = vmatprep.subr.bf16.mxu0 %v1086
    %1355 = vmatpush2.bf16.msra.mxu0 %v1085
    %1356 = vmatprep.subr.bf16.mxu0 %v1082
    %1357 = vmatpush2.bf16.msra.mxu0 %v1081
    %1358 = vmatprep.subr.bf16.mxu0 %v1078
    %1359 = vmatpush2.bf16.msra.mxu0 %v1077
    %1360 = vmatprep.subr.bf16.mxu0 %v1074
    %1361 = vmatpush2.bf16.msra.mxu0 %v1073
    %1362 = vmatprep.subr.bf16.mxu0 %v1070
    %1363 = vmatpush2.bf16.msra.mxu0 %v1069
    %1364 = vmatprep.subr.bf16.mxu0 %v1066
    %1365 = vmatpush2.bf16.msra.mxu0 %v1065
    %1366 = vmatprep.subr.bf16.mxu0 %v1062
    %1367 = vmatpush2.bf16.msra.mxu0 %v1061
    %1368 = vmatprep.subr.bf16.mxu0 %v1058
    %1369 = vmatpush2.bf16.msra.mxu0 %v1057
    %1370 = vmatprep.mubr.bf16.mxu0 %v424
    %1371 = vmatmul.mubr.bf16.gmra.mxu0 %v423
    %v1372 = vpop.f32.mrf.mxu0
    %v1373 = vadd.f32 %v1332, %v1372
    %v1374 = vpop.f32.mrf.mxu0
    %v1375 = vadd.f32 %v1334, %v1374
    %v1376 = vpop.f32.mrf.mxu0
    %v1377 = vpop.f32.mrf.mxu0
    %1378 = vdwg.mxu0
    %vm1379 = vcmp.ge.f32.partialorder %v1291, 0.0
    %vm1380 = vcmp.ge.f32.partialorder %v1293, 0.0
    %vm1381 = vcmp.ge.f32.partialorder %v1373, 0.0
    %vm1382 = vcmp.ge.f32.partialorder %v1375, 0.0
    %v1383 = vmul.f32 %v1291, 0.2
    %v1384 = vmul.f32 %v1293, 0.2
    %v1385 = vmul.f32 %v1373, 0.2
    %v1386 = vmul.f32 %v1375, 0.2
    %v1387 = vsel %vm1379, %v1291, %v1383
    %v1388 = vsel %vm1380, %v1293, %v1384
    %v1389 = vsel %vm1381, %v1373, %v1385
    %v1390 = vsel %vm1382, %v1375, %v1386
    %v1391 = vpack.c.bf16 %v1387, %v1387
    %v1392 = vpack.c.bf16 %v1388, %v1388
    %v1393 = vpack.c.bf16 %v1389, %v1389
    %v1394 = vpack.c.bf16 %v1390, %v1390
    %v1395 = vld [vmem:[#allocation10] sm:$0xff]
    %v1396 = vld [vmem:[#allocation10 + $0x8] sm:$0xff]
    %v1397 = vld [vmem:[#allocation10 + $0x10] sm:$0xff]
    %v1398 = vld [vmem:[#allocation10 + $0x18] sm:$0xff]
    %v1399 = vld [vmem:[#allocation10 + $0x20] sm:$0xff]
    %v1400 = vld [vmem:[#allocation10 + $0x28] sm:$0xff]
    %v1401 = vld [vmem:[#allocation10 + $0x30] sm:$0xff]
    %v1402 = vld [vmem:[#allocation10 + $0x38] sm:$0xff]
    %v1403 = vld [vmem:[#allocation10 + $0x40] sm:$0xff]
    %v1404 = vld [vmem:[#allocation10 + $0x48] sm:$0xff]
    %v1405 = vld [vmem:[#allocation10 + $0x50] sm:$0xff]
    %v1406 = vld [vmem:[#allocation10 + $0x58] sm:$0xff]
    %v1407 = vld [vmem:[#allocation10 + $0x60] sm:$0xff]
    %v1408 = vld [vmem:[#allocation10 + $0x68] sm:$0xff]
    %v1409 = vld [vmem:[#allocation10 + $0x70] sm:$0xff]
    %v1410 = vld [vmem:[#allocation10 + $0x78] sm:$0xff]
    %v1411 = vld [vmem:[#allocation10 + $0x80] sm:$0xff]
    %v1412 = vld [vmem:[#allocation10 + $0x88] sm:$0xff]
    %v1413 = vld [vmem:[#allocation10 + $0x90] sm:$0xff]
    %v1414 = vld [vmem:[#allocation10 + $0x98] sm:$0xff]
    %v1415 = vld [vmem:[#allocation10 + $0xa0] sm:$0xff]
    %v1416 = vld [vmem:[#allocation10 + $0xa8] sm:$0xff]
    %v1417 = vld [vmem:[#allocation10 + $0xb0] sm:$0xff]
    %v1418 = vld [vmem:[#allocation10 + $0xb8] sm:$0xff]
    %v1419 = vld [vmem:[#allocation10 + $0xc0] sm:$0xff]
    %v1420 = vld [vmem:[#allocation10 + $0xc8] sm:$0xff]
    %v1421 = vld [vmem:[#allocation10 + $0xd0] sm:$0xff]
    %v1422 = vld [vmem:[#allocation10 + $0xd8] sm:$0xff]
    %v1423 = vld [vmem:[#allocation10 + $0xe0] sm:$0xff]
    %v1424 = vld [vmem:[#allocation10 + $0xe8] sm:$0xff]
    %v1425 = vld [vmem:[#allocation10 + $0xf0] sm:$0xff]
    %v1426 = vld [vmem:[#allocation10 + $0xf8] sm:$0xff]
    %v1427 = vld [vmem:[#allocation10 + $0x100] sm:$0xff]
    %v1428 = vld [vmem:[#allocation10 + $0x108] sm:$0xff]
    %v1429 = vld [vmem:[#allocation10 + $0x110] sm:$0xff]
    %v1430 = vld [vmem:[#allocation10 + $0x118] sm:$0xff]
    %v1431 = vld [vmem:[#allocation10 + $0x120] sm:$0xff]
    %v1432 = vld [vmem:[#allocation10 + $0x128] sm:$0xff]
    %v1433 = vld [vmem:[#allocation10 + $0x130] sm:$0xff]
    %v1434 = vld [vmem:[#allocation10 + $0x138] sm:$0xff]
    %v1435 = vld [vmem:[#allocation10 + $0x140] sm:$0xff]
    %v1436 = vld [vmem:[#allocation10 + $0x148] sm:$0xff]
    %v1437 = vld [vmem:[#allocation10 + $0x150] sm:$0xff]
    %v1438 = vld [vmem:[#allocation10 + $0x158] sm:$0xff]
    %v1439 = vld [vmem:[#allocation10 + $0x160] sm:$0xff]
    %v1440 = vld [vmem:[#allocation10 + $0x168] sm:$0xff]
    %v1441 = vld [vmem:[#allocation10 + $0x170] sm:$0xff]
    %v1442 = vld [vmem:[#allocation10 + $0x178] sm:$0xff]
    %v1443 = vld [vmem:[#allocation10 + $0x180] sm:$0xff]
    %v1444 = vld [vmem:[#allocation10 + $0x188] sm:$0xff]
    %v1445 = vld [vmem:[#allocation10 + $0x190] sm:$0xff]
    %v1446 = vld [vmem:[#allocation10 + $0x198] sm:$0xff]
    %v1447 = vld [vmem:[#allocation10 + $0x1a0] sm:$0xff]
    %v1448 = vld [vmem:[#allocation10 + $0x1a8] sm:$0xff]
    %v1449 = vld [vmem:[#allocation10 + $0x1b0] sm:$0xff]
    %v1450 = vld [vmem:[#allocation10 + $0x1b8] sm:$0xff]
    %v1451 = vld [vmem:[#allocation10 + $0x1c0] sm:$0xff]
    %v1452 = vld [vmem:[#allocation10 + $0x1c8] sm:$0xff]
    %v1453 = vld [vmem:[#allocation10 + $0x1d0] sm:$0xff]
    %v1454 = vld [vmem:[#allocation10 + $0x1d8] sm:$0xff]
    %v1455 = vld [vmem:[#allocation10 + $0x1e0] sm:$0xff]
    %v1456 = vld [vmem:[#allocation10 + $0x1e8] sm:$0xff]
    %v1457 = vld [vmem:[#allocation10 + $0x1f0] sm:$0xff]
    %v1458 = vld [vmem:[#allocation10 + $0x1f8] sm:$0xff]
    %v1459 = vld [vmem:[#allocation10 + $0x200] sm:$0xff]
    %v1460 = vld [vmem:[#allocation10 + $0x208] sm:$0xff]
    %v1461 = vld [vmem:[#allocation10 + $0x210] sm:$0xff]
    %v1462 = vld [vmem:[#allocation10 + $0x218] sm:$0xff]
    %v1463 = vld [vmem:[#allocation10 + $0x220] sm:$0xff]
    %v1464 = vld [vmem:[#allocation10 + $0x228] sm:$0xff]
    %v1465 = vld [vmem:[#allocation10 + $0x230] sm:$0xff]
    %v1466 = vld [vmem:[#allocation10 + $0x238] sm:$0xff]
    %v1467 = vld [vmem:[#allocation10 + $0x240] sm:$0xff]
    %v1468 = vld [vmem:[#allocation10 + $0x248] sm:$0xff]
    %v1469 = vld [vmem:[#allocation10 + $0x250] sm:$0xff]
    %v1470 = vld [vmem:[#allocation10 + $0x258] sm:$0xff]
    %v1471 = vld [vmem:[#allocation10 + $0x260] sm:$0xff]
    %v1472 = vld [vmem:[#allocation10 + $0x268] sm:$0xff]
    %v1473 = vld [vmem:[#allocation10 + $0x270] sm:$0xff]
    %v1474 = vld [vmem:[#allocation10 + $0x278] sm:$0xff]
    %v1475 = vld [vmem:[#allocation10 + $0x280] sm:$0xff]
    %v1476 = vld [vmem:[#allocation10 + $0x288] sm:$0xff]
    %v1477 = vld [vmem:[#allocation10 + $0x290] sm:$0xff]
    %v1478 = vld [vmem:[#allocation10 + $0x298] sm:$0xff]
    %v1479 = vld [vmem:[#allocation10 + $0x2a0] sm:$0xff]
    %v1480 = vld [vmem:[#allocation10 + $0x2a8] sm:$0xff]
    %v1481 = vld [vmem:[#allocation10 + $0x2b0] sm:$0xff]
    %v1482 = vld [vmem:[#allocation10 + $0x2b8] sm:$0xff]
    %v1483 = vld [vmem:[#allocation10 + $0x2c0] sm:$0xff]
    %v1484 = vld [vmem:[#allocation10 + $0x2c8] sm:$0xff]
    %v1485 = vld [vmem:[#allocation10 + $0x2d0] sm:$0xff]
    %v1486 = vld [vmem:[#allocation10 + $0x2d8] sm:$0xff]
    %v1487 = vld [vmem:[#allocation10 + $0x2e0] sm:$0xff]
    %v1488 = vld [vmem:[#allocation10 + $0x2e8] sm:$0xff]
    %v1489 = vld [vmem:[#allocation10 + $0x2f0] sm:$0xff]
    %v1490 = vld [vmem:[#allocation10 + $0x2f8] sm:$0xff]
    %v1491 = vld [vmem:[#allocation10 + $0x300] sm:$0xff]
    %v1492 = vld [vmem:[#allocation10 + $0x308] sm:$0xff]
    %v1493 = vld [vmem:[#allocation10 + $0x310] sm:$0xff]
    %v1494 = vld [vmem:[#allocation10 + $0x318] sm:$0xff]
    %v1495 = vld [vmem:[#allocation10 + $0x320] sm:$0xff]
    %v1496 = vld [vmem:[#allocation10 + $0x328] sm:$0xff]
    %v1497 = vld [vmem:[#allocation10 + $0x330] sm:$0xff]
    %v1498 = vld [vmem:[#allocation10 + $0x338] sm:$0xff]
    %v1499 = vld [vmem:[#allocation10 + $0x340] sm:$0xff]
    %v1500 = vld [vmem:[#allocation10 + $0x348] sm:$0xff]
    %v1501 = vld [vmem:[#allocation10 + $0x350] sm:$0xff]
    %v1502 = vld [vmem:[#allocation10 + $0x358] sm:$0xff]
    %v1503 = vld [vmem:[#allocation10 + $0x360] sm:$0xff]
    %v1504 = vld [vmem:[#allocation10 + $0x368] sm:$0xff]
    %v1505 = vld [vmem:[#allocation10 + $0x370] sm:$0xff]
    %v1506 = vld [vmem:[#allocation10 + $0x378] sm:$0xff]
    %v1507 = vld [vmem:[#allocation10 + $0x380] sm:$0xff]
    %v1508 = vld [vmem:[#allocation10 + $0x388] sm:$0xff]
    %v1509 = vld [vmem:[#allocation10 + $0x390] sm:$0xff]
    %v1510 = vld [vmem:[#allocation10 + $0x398] sm:$0xff]
    %v1511 = vld [vmem:[#allocation10 + $0x3a0] sm:$0xff]
    %v1512 = vld [vmem:[#allocation10 + $0x3a8] sm:$0xff]
    %v1513 = vld [vmem:[#allocation10 + $0x3b0] sm:$0xff]
    %v1514 = vld [vmem:[#allocation10 + $0x3b8] sm:$0xff]
    %v1515 = vld [vmem:[#allocation10 + $0x3c0] sm:$0xff]
    %v1516 = vld [vmem:[#allocation10 + $0x3c8] sm:$0xff]
    %v1517 = vld [vmem:[#allocation10 + $0x3d0] sm:$0xff]
    %v1518 = vld [vmem:[#allocation10 + $0x3d8] sm:$0xff]
    %v1519 = vld [vmem:[#allocation10 + $0x3e0] sm:$0xff]
    %v1520 = vld [vmem:[#allocation10 + $0x3e8] sm:$0xff]
    %v1521 = vld [vmem:[#allocation10 + $0x3f0] sm:$0xff]
    %v1522 = vld [vmem:[#allocation10 + $0x3f8] sm:$0xff]
    %v1523 = vld [vmem:[%s6] sm:$0xf]
    %v1525 = vlaneseq
    %v1526 = vshrl.u32 %v1525, 7
    %v1527 = vsub.s32 0, %v1526
    %v1528 = vrot.slane %v1523, %v1527
    %v1529 = vlaneseq
    %v1530 = vshrl.u32 %v1529, 7
    %v1531 = vsub.s32 1, %v1530
    %v1532 = vrot.slane %v1523, %v1531
    %v1533 = vlaneseq
    %v1534 = vshrl.u32 %v1533, 7
    %v1535 = vsub.s32 2, %v1534
    %v1536 = vrot.slane %v1523, %v1535
    %v1537 = vlaneseq
    %v1538 = vshrl.u32 %v1537, 7
    %v1539 = vsub.s32 3, %v1538
    %v1540 = vrot.slane %v1523, %v1539
    %v1673 = vunpack.c.l.b16 %v1395
    %v1674 = vunpack.c.h.b16 %v1395
    %v1675 = vunpack.c.l.b16 %v1396
    %v1676 = vunpack.c.h.b16 %v1396
    %v1677 = vunpack.c.l.b16 %v1397
    %v1678 = vunpack.c.h.b16 %v1397
    %v1679 = vunpack.c.l.b16 %v1398
    %v1680 = vunpack.c.h.b16 %v1398
    %v1681 = vunpack.c.l.b16 %v1399
    %v1682 = vunpack.c.h.b16 %v1399
    %v1683 = vunpack.c.l.b16 %v1400
    %v1684 = vunpack.c.h.b16 %v1400
    %v1685 = vunpack.c.l.b16 %v1401
    %v1686 = vunpack.c.h.b16 %v1401
    %v1687 = vunpack.c.l.b16 %v1402
    %v1688 = vunpack.c.h.b16 %v1402
    %v1689 = vunpack.c.l.b16 %v1403
    %v1690 = vunpack.c.h.b16 %v1403
    %v1691 = vunpack.c.l.b16 %v1404
    %v1692 = vunpack.c.h.b16 %v1404
    %v1693 = vunpack.c.l.b16 %v1405
    %v1694 = vunpack.c.h.b16 %v1405
    %v1695 = vunpack.c.l.b16 %v1406
    %v1696 = vunpack.c.h.b16 %v1406
    %v1697 = vunpack.c.l.b16 %v1407
    %v1698 = vunpack.c.h.b16 %v1407
    %v1699 = vunpack.c.l.b16 %v1408
    %v1700 = vunpack.c.h.b16 %v1408
    %v1701 = vunpack.c.l.b16 %v1409
    %v1702 = vunpack.c.h.b16 %v1409
    %v1703 = vunpack.c.l.b16 %v1410
    %v1704 = vunpack.c.h.b16 %v1410
    %v1705 = vunpack.c.l.b16 %v1411
    %v1706 = vunpack.c.h.b16 %v1411
    %v1707 = vunpack.c.l.b16 %v1412
    %v1708 = vunpack.c.h.b16 %v1412
    %v1709 = vunpack.c.l.b16 %v1413
    %v1710 = vunpack.c.h.b16 %v1413
    %v1711 = vunpack.c.l.b16 %v1414
    %v1712 = vunpack.c.h.b16 %v1414
    %v1713 = vunpack.c.l.b16 %v1415
    %v1714 = vunpack.c.h.b16 %v1415
    %v1715 = vunpack.c.l.b16 %v1416
    %v1716 = vunpack.c.h.b16 %v1416
    %v1717 = vunpack.c.l.b16 %v1417
    %v1718 = vunpack.c.h.b16 %v1417
    %v1719 = vunpack.c.l.b16 %v1418
    %v1720 = vunpack.c.h.b16 %v1418
    %v1721 = vunpack.c.l.b16 %v1419
    %v1722 = vunpack.c.h.b16 %v1419
    %v1723 = vunpack.c.l.b16 %v1420
    %v1724 = vunpack.c.h.b16 %v1420
    %v1725 = vunpack.c.l.b16 %v1421
    %v1726 = vunpack.c.h.b16 %v1421
    %v1727 = vunpack.c.l.b16 %v1422
    %v1728 = vunpack.c.h.b16 %v1422
    %v1729 = vunpack.c.l.b16 %v1423
    %v1730 = vunpack.c.h.b16 %v1423
    %v1731 = vunpack.c.l.b16 %v1424
    %v1732 = vunpack.c.h.b16 %v1424
    %v1733 = vunpack.c.l.b16 %v1425
    %v1734 = vunpack.c.h.b16 %v1425
    %v1735 = vunpack.c.l.b16 %v1426
    %v1736 = vunpack.c.h.b16 %v1426
    %v1737 = vunpack.c.l.b16 %v1427
    %v1738 = vunpack.c.h.b16 %v1427
    %v1739 = vunpack.c.l.b16 %v1428
    %v1740 = vunpack.c.h.b16 %v1428
    %v1741 = vunpack.c.l.b16 %v1429
    %v1742 = vunpack.c.h.b16 %v1429
    %v1743 = vunpack.c.l.b16 %v1430
    %v1744 = vunpack.c.h.b16 %v1430
    %v1745 = vunpack.c.l.b16 %v1431
    %v1746 = vunpack.c.h.b16 %v1431
    %v1747 = vunpack.c.l.b16 %v1432
    %v1748 = vunpack.c.h.b16 %v1432
    %v1749 = vunpack.c.l.b16 %v1433
    %v1750 = vunpack.c.h.b16 %v1433
    %v1751 = vunpack.c.l.b16 %v1434
    %v1752 = vunpack.c.h.b16 %v1434
    %v1753 = vunpack.c.l.b16 %v1435
    %v1754 = vunpack.c.h.b16 %v1435
    %v1755 = vunpack.c.l.b16 %v1436
    %v1756 = vunpack.c.h.b16 %v1436
    %v1757 = vunpack.c.l.b16 %v1437
    %v1758 = vunpack.c.h.b16 %v1437
    %v1759 = vunpack.c.l.b16 %v1438
    %v1760 = vunpack.c.h.b16 %v1438
    %v1761 = vunpack.c.l.b16 %v1439
    %v1762 = vunpack.c.h.b16 %v1439
    %v1763 = vunpack.c.l.b16 %v1440
    %v1764 = vunpack.c.h.b16 %v1440
    %v1765 = vunpack.c.l.b16 %v1441
    %v1766 = vunpack.c.h.b16 %v1441
    %v1767 = vunpack.c.l.b16 %v1442
    %v1768 = vunpack.c.h.b16 %v1442
    %v1769 = vunpack.c.l.b16 %v1443
    %v1770 = vunpack.c.h.b16 %v1443
    %v1771 = vunpack.c.l.b16 %v1444
    %v1772 = vunpack.c.h.b16 %v1444
    %v1773 = vunpack.c.l.b16 %v1445
    %v1774 = vunpack.c.h.b16 %v1445
    %v1775 = vunpack.c.l.b16 %v1446
    %v1776 = vunpack.c.h.b16 %v1446
    %v1777 = vunpack.c.l.b16 %v1447
    %v1778 = vunpack.c.h.b16 %v1447
    %v1779 = vunpack.c.l.b16 %v1448
    %v1780 = vunpack.c.h.b16 %v1448
    %v1781 = vunpack.c.l.b16 %v1449
    %v1782 = vunpack.c.h.b16 %v1449
    %v1783 = vunpack.c.l.b16 %v1450
    %v1784 = vunpack.c.h.b16 %v1450
    %v1785 = vunpack.c.l.b16 %v1451
    %v1786 = vunpack.c.h.b16 %v1451
    %v1787 = vunpack.c.l.b16 %v1452
    %v1788 = vunpack.c.h.b16 %v1452
    %v1789 = vunpack.c.l.b16 %v1453
    %v1790 = vunpack.c.h.b16 %v1453
    %v1791 = vunpack.c.l.b16 %v1454
    %v1792 = vunpack.c.h.b16 %v1454
    %v1793 = vunpack.c.l.b16 %v1455
    %v1794 = vunpack.c.h.b16 %v1455
    %v1795 = vunpack.c.l.b16 %v1456
    %v1796 = vunpack.c.h.b16 %v1456
    %v1797 = vunpack.c.l.b16 %v1457
    %v1798 = vunpack.c.h.b16 %v1457
    %v1799 = vunpack.c.l.b16 %v1458
    %v1800 = vunpack.c.h.b16 %v1458
    %v1801 = vunpack.c.l.b16 %v1459
    %v1802 = vunpack.c.h.b16 %v1459
    %v1803 = vunpack.c.l.b16 %v1460
    %v1804 = vunpack.c.h.b16 %v1460
    %v1805 = vunpack.c.l.b16 %v1461
    %v1806 = vunpack.c.h.b16 %v1461
    %v1807 = vunpack.c.l.b16 %v1462
    %v1808 = vunpack.c.h.b16 %v1462
    %v1809 = vunpack.c.l.b16 %v1463
    %v1810 = vunpack.c.h.b16 %v1463
    %v1811 = vunpack.c.l.b16 %v1464
    %v1812 = vunpack.c.h.b16 %v1464
    %v1813 = vunpack.c.l.b16 %v1465
    %v1814 = vunpack.c.h.b16 %v1465
    %v1815 = vunpack.c.l.b16 %v1466
    %v1816 = vunpack.c.h.b16 %v1466
    %v1817 = vunpack.c.l.b16 %v1467
    %v1818 = vunpack.c.h.b16 %v1467
    %v1819 = vunpack.c.l.b16 %v1468
    %v1820 = vunpack.c.h.b16 %v1468
    %v1821 = vunpack.c.l.b16 %v1469
    %v1822 = vunpack.c.h.b16 %v1469
    %v1823 = vunpack.c.l.b16 %v1470
    %v1824 = vunpack.c.h.b16 %v1470
    %v1825 = vunpack.c.l.b16 %v1471
    %v1826 = vunpack.c.h.b16 %v1471
    %v1827 = vunpack.c.l.b16 %v1472
    %v1828 = vunpack.c.h.b16 %v1472
    %v1829 = vunpack.c.l.b16 %v1473
    %v1830 = vunpack.c.h.b16 %v1473
    %v1831 = vunpack.c.l.b16 %v1474
    %v1832 = vunpack.c.h.b16 %v1474
    %v1833 = vunpack.c.l.b16 %v1475
    %v1834 = vunpack.c.h.b16 %v1475
    %v1835 = vunpack.c.l.b16 %v1476
    %v1836 = vunpack.c.h.b16 %v1476
    %v1837 = vunpack.c.l.b16 %v1477
    %v1838 = vunpack.c.h.b16 %v1477
    %v1839 = vunpack.c.l.b16 %v1478
    %v1840 = vunpack.c.h.b16 %v1478
    %v1841 = vunpack.c.l.b16 %v1479
    %v1842 = vunpack.c.h.b16 %v1479
    %v1843 = vunpack.c.l.b16 %v1480
    %v1844 = vunpack.c.h.b16 %v1480
    %v1845 = vunpack.c.l.b16 %v1481
    %v1846 = vunpack.c.h.b16 %v1481
    %v1847 = vunpack.c.l.b16 %v1482
    %v1848 = vunpack.c.h.b16 %v1482
    %v1849 = vunpack.c.l.b16 %v1483
    %v1850 = vunpack.c.h.b16 %v1483
    %v1851 = vunpack.c.l.b16 %v1484
    %v1852 = vunpack.c.h.b16 %v1484
    %v1853 = vunpack.c.l.b16 %v1485
    %v1854 = vunpack.c.h.b16 %v1485
    %v1855 = vunpack.c.l.b16 %v1486
    %v1856 = vunpack.c.h.b16 %v1486
    %v1857 = vunpack.c.l.b16 %v1487
    %v1858 = vunpack.c.h.b16 %v1487
    %v1859 = vunpack.c.l.b16 %v1488
    %v1860 = vunpack.c.h.b16 %v1488
    %v1861 = vunpack.c.l.b16 %v1489
    %v1862 = vunpack.c.h.b16 %v1489
    %v1863 = vunpack.c.l.b16 %v1490
    %v1864 = vunpack.c.h.b16 %v1490
    %v1865 = vunpack.c.l.b16 %v1491
    %v1866 = vunpack.c.h.b16 %v1491
    %v1867 = vunpack.c.l.b16 %v1492
    %v1868 = vunpack.c.h.b16 %v1492
    %v1869 = vunpack.c.l.b16 %v1493
    %v1870 = vunpack.c.h.b16 %v1493
    %v1871 = vunpack.c.l.b16 %v1494
    %v1872 = vunpack.c.h.b16 %v1494
    %v1873 = vunpack.c.l.b16 %v1495
    %v1874 = vunpack.c.h.b16 %v1495
    %v1875 = vunpack.c.l.b16 %v1496
    %v1876 = vunpack.c.h.b16 %v1496
    %v1877 = vunpack.c.l.b16 %v1497
    %v1878 = vunpack.c.h.b16 %v1497
    %v1879 = vunpack.c.l.b16 %v1498
    %v1880 = vunpack.c.h.b16 %v1498
    %v1881 = vunpack.c.l.b16 %v1499
    %v1882 = vunpack.c.h.b16 %v1499
    %v1883 = vunpack.c.l.b16 %v1500
    %v1884 = vunpack.c.h.b16 %v1500
    %v1885 = vunpack.c.l.b16 %v1501
    %v1886 = vunpack.c.h.b16 %v1501
    %v1887 = vunpack.c.l.b16 %v1502
    %v1888 = vunpack.c.h.b16 %v1502
    %v1889 = vunpack.c.l.b16 %v1503
    %v1890 = vunpack.c.h.b16 %v1503
    %v1891 = vunpack.c.l.b16 %v1504
    %v1892 = vunpack.c.h.b16 %v1504
    %v1893 = vunpack.c.l.b16 %v1505
    %v1894 = vunpack.c.h.b16 %v1505
    %v1895 = vunpack.c.l.b16 %v1506
    %v1896 = vunpack.c.h.b16 %v1506
    %v1897 = vunpack.c.l.b16 %v1507
    %v1898 = vunpack.c.h.b16 %v1507
    %v1899 = vunpack.c.l.b16 %v1508
    %v1900 = vunpack.c.h.b16 %v1508
    %v1901 = vunpack.c.l.b16 %v1509
    %v1902 = vunpack.c.h.b16 %v1509
    %v1903 = vunpack.c.l.b16 %v1510
    %v1904 = vunpack.c.h.b16 %v1510
    %v1905 = vunpack.c.l.b16 %v1511
    %v1906 = vunpack.c.h.b16 %v1511
    %v1907 = vunpack.c.l.b16 %v1512
    %v1908 = vunpack.c.h.b16 %v1512
    %v1909 = vunpack.c.l.b16 %v1513
    %v1910 = vunpack.c.h.b16 %v1513
    %v1911 = vunpack.c.l.b16 %v1514
    %v1912 = vunpack.c.h.b16 %v1514
    %v1913 = vunpack.c.l.b16 %v1515
    %v1914 = vunpack.c.h.b16 %v1515
    %v1915 = vunpack.c.l.b16 %v1516
    %v1916 = vunpack.c.h.b16 %v1516
    %v1917 = vunpack.c.l.b16 %v1517
    %v1918 = vunpack.c.h.b16 %v1517
    %v1919 = vunpack.c.l.b16 %v1518
    %v1920 = vunpack.c.h.b16 %v1518
    %v1921 = vunpack.c.l.b16 %v1519
    %v1922 = vunpack.c.h.b16 %v1519
    %v1923 = vunpack.c.l.b16 %v1520
    %v1924 = vunpack.c.h.b16 %v1520
    %v1925 = vunpack.c.l.b16 %v1521
    %v1926 = vunpack.c.h.b16 %v1521
    %v1927 = vunpack.c.l.b16 %v1522
    %v1928 = vunpack.c.h.b16 %v1522
    %v1929 = vpack.c.b16 %v1677, %v1673
    %v1930 = vpack.c.b16 %v1678, %v1674
    %v1931 = vpack.c.b16 %v1679, %v1675
    %v1932 = vpack.c.b16 %v1680, %v1676
    %v1933 = vpack.c.b16 %v1685, %v1681
    %v1934 = vpack.c.b16 %v1686, %v1682
    %v1935 = vpack.c.b16 %v1687, %v1683
    %v1936 = vpack.c.b16 %v1688, %v1684
    %v1937 = vpack.c.b16 %v1693, %v1689
    %v1938 = vpack.c.b16 %v1694, %v1690
    %v1939 = vpack.c.b16 %v1695, %v1691
    %v1940 = vpack.c.b16 %v1696, %v1692
    %v1941 = vpack.c.b16 %v1701, %v1697
    %v1942 = vpack.c.b16 %v1702, %v1698
    %v1943 = vpack.c.b16 %v1703, %v1699
    %v1944 = vpack.c.b16 %v1704, %v1700
    %v1945 = vpack.c.b16 %v1709, %v1705
    %v1946 = vpack.c.b16 %v1710, %v1706
    %v1947 = vpack.c.b16 %v1711, %v1707
    %v1948 = vpack.c.b16 %v1712, %v1708
    %v1949 = vpack.c.b16 %v1717, %v1713
    %v1950 = vpack.c.b16 %v1718, %v1714
    %v1951 = vpack.c.b16 %v1719, %v1715
    %v1952 = vpack.c.b16 %v1720, %v1716
    %v1953 = vpack.c.b16 %v1725, %v1721
    %v1954 = vpack.c.b16 %v1726, %v1722
    %v1955 = vpack.c.b16 %v1727, %v1723
    %v1956 = vpack.c.b16 %v1728, %v1724
    %v1957 = vpack.c.b16 %v1733, %v1729
    %v1958 = vpack.c.b16 %v1734, %v1730
    %v1959 = vpack.c.b16 %v1735, %v1731
    %v1960 = vpack.c.b16 %v1736, %v1732
    %v1961 = vpack.c.b16 %v1741, %v1737
    %v1962 = vpack.c.b16 %v1742, %v1738
    %v1963 = vpack.c.b16 %v1743, %v1739
    %v1964 = vpack.c.b16 %v1744, %v1740
    %v1965 = vpack.c.b16 %v1749, %v1745
    %v1966 = vpack.c.b16 %v1750, %v1746
    %v1967 = vpack.c.b16 %v1751, %v1747
    %v1968 = vpack.c.b16 %v1752, %v1748
    %v1969 = vpack.c.b16 %v1757, %v1753
    %v1970 = vpack.c.b16 %v1758, %v1754
    %v1971 = vpack.c.b16 %v1759, %v1755
    %v1972 = vpack.c.b16 %v1760, %v1756
    %v1973 = vpack.c.b16 %v1765, %v1761
    %v1974 = vpack.c.b16 %v1766, %v1762
    %v1975 = vpack.c.b16 %v1767, %v1763
    %v1976 = vpack.c.b16 %v1768, %v1764
    %v1977 = vpack.c.b16 %v1773, %v1769
    %v1978 = vpack.c.b16 %v1774, %v1770
    %v1979 = vpack.c.b16 %v1775, %v1771
    %v1980 = vpack.c.b16 %v1776, %v1772
    %v1981 = vpack.c.b16 %v1781, %v1777
    %v1982 = vpack.c.b16 %v1782, %v1778
    %v1983 = vpack.c.b16 %v1783, %v1779
    %v1984 = vpack.c.b16 %v1784, %v1780
    %v1985 = vpack.c.b16 %v1789, %v1785
    %v1986 = vpack.c.b16 %v1790, %v1786
    %v1987 = vpack.c.b16 %v1791, %v1787
    %v1988 = vpack.c.b16 %v1792, %v1788
    %v1989 = vpack.c.b16 %v1797, %v1793
    %v1990 = vpack.c.b16 %v1798, %v1794
    %v1991 = vpack.c.b16 %v1799, %v1795
    %v1992 = vpack.c.b16 %v1800, %v1796
    %v1993 = vpack.c.b16 %v1805, %v1801
    %v1994 = vpack.c.b16 %v1806, %v1802
    %v1995 = vpack.c.b16 %v1807, %v1803
    %v1996 = vpack.c.b16 %v1808, %v1804
    %v1997 = vpack.c.b16 %v1813, %v1809
    %v1998 = vpack.c.b16 %v1814, %v1810
    %v1999 = vpack.c.b16 %v1815, %v1811
    %v2000 = vpack.c.b16 %v1816, %v1812
    %v2001 = vpack.c.b16 %v1821, %v1817
    %v2002 = vpack.c.b16 %v1822, %v1818
    %v2003 = vpack.c.b16 %v1823, %v1819
    %v2004 = vpack.c.b16 %v1824, %v1820
    %v2005 = vpack.c.b16 %v1829, %v1825
    %v2006 = vpack.c.b16 %v1830, %v1826
    %v2007 = vpack.c.b16 %v1831, %v1827
    %v2008 = vpack.c.b16 %v1832, %v1828
    %v2009 = vpack.c.b16 %v1837, %v1833
    %v2010 = vpack.c.b16 %v1838, %v1834
    %v2011 = vpack.c.b16 %v1839, %v1835
    %v2012 = vpack.c.b16 %v1840, %v1836
    %v2013 = vpack.c.b16 %v1845, %v1841
    %v2014 = vpack.c.b16 %v1846, %v1842
    %v2015 = vpack.c.b16 %v1847, %v1843
    %v2016 = vpack.c.b16 %v1848, %v1844
    %v2017 = vpack.c.b16 %v1853, %v1849
    %v2018 = vpack.c.b16 %v1854, %v1850
    %v2019 = vpack.c.b16 %v1855, %v1851
    %v2020 = vpack.c.b16 %v1856, %v1852
    %v2021 = vpack.c.b16 %v1861, %v1857
    %v2022 = vpack.c.b16 %v1862, %v1858
    %v2023 = vpack.c.b16 %v1863, %v1859
    %v2024 = vpack.c.b16 %v1864, %v1860
    %v2025 = vpack.c.b16 %v1869, %v1865
    %v2026 = vpack.c.b16 %v1870, %v1866
    %v2027 = vpack.c.b16 %v1871, %v1867
    %v2028 = vpack.c.b16 %v1872, %v1868
    %v2029 = vpack.c.b16 %v1877, %v1873
    %v2030 = vpack.c.b16 %v1878, %v1874
    %v2031 = vpack.c.b16 %v1879, %v1875
    %v2032 = vpack.c.b16 %v1880, %v1876
    %v2033 = vpack.c.b16 %v1885, %v1881
    %v2034 = vpack.c.b16 %v1886, %v1882
    %v2035 = vpack.c.b16 %v1887, %v1883
    %v2036 = vpack.c.b16 %v1888, %v1884
    %v2037 = vpack.c.b16 %v1893, %v1889
    %v2038 = vpack.c.b16 %v1894, %v1890
    %v2039 = vpack.c.b16 %v1895, %v1891
    %v2040 = vpack.c.b16 %v1896, %v1892
    %v2041 = vpack.c.b16 %v1901, %v1897
    %v2042 = vpack.c.b16 %v1902, %v1898
    %v2043 = vpack.c.b16 %v1903, %v1899
    %v2044 = vpack.c.b16 %v1904, %v1900
    %v2045 = vpack.c.b16 %v1909, %v1905
    %v2046 = vpack.c.b16 %v1910, %v1906
    %v2047 = vpack.c.b16 %v1911, %v1907
    %v2048 = vpack.c.b16 %v1912, %v1908
    %v2049 = vpack.c.b16 %v1917, %v1913
    %v2050 = vpack.c.b16 %v1918, %v1914
    %v2051 = vpack.c.b16 %v1919, %v1915
    %v2052 = vpack.c.b16 %v1920, %v1916
    %v2053 = vpack.c.b16 %v1925, %v1921
    %v2054 = vpack.c.b16 %v1926, %v1922
    %v2055 = vpack.c.b16 %v1927, %v1923
    %v2056 = vpack.c.b16 %v1928, %v1924
    %2185 = vmatprep.subr.bf16.mxu0 %v1958
    %2186 = vmatpush1.bf16.msra.mxu0 %v1957
    %2187 = vmatprep.subr.bf16.mxu0 %v1954
    %2188 = vmatpush1.bf16.msra.mxu0 %v1953
    %2189 = vmatprep.subr.bf16.mxu0 %v1950
    %2190 = vmatpush1.bf16.msra.mxu0 %v1949
    %2191 = vmatprep.subr.bf16.mxu0 %v1946
    %2192 = vmatpush1.bf16.msra.mxu0 %v1945
    %2193 = vmatprep.subr.bf16.mxu0 %v1942
    %2194 = vmatpush1.bf16.msra.mxu0 %v1941
    %2195 = vmatprep.subr.bf16.mxu0 %v1938
    %2196 = vmatpush1.bf16.msra.mxu0 %v1937
    %2197 = vmatprep.subr.bf16.mxu0 %v1934
    %2198 = vmatpush1.bf16.msra.mxu0 %v1933
    %2199 = vmatprep.subr.bf16.mxu0 %v1930
    %2200 = vmatpush1.bf16.msra.mxu0 %v1929
    %2201 = vmatprep.subr.bf16.mxu0 %v1990
    %2202 = vmatpush2.bf16.msra.mxu0 %v1989
    %2203 = vmatprep.subr.bf16.mxu0 %v1986
    %2204 = vmatpush2.bf16.msra.mxu0 %v1985
    %2205 = vmatprep.subr.bf16.mxu0 %v1982
    %2206 = vmatpush2.bf16.msra.mxu0 %v1981
    %2207 = vmatprep.subr.bf16.mxu0 %v1978
    %2208 = vmatpush2.bf16.msra.mxu0 %v1977
    %2209 = vmatprep.subr.bf16.mxu0 %v1974
    %2210 = vmatpush2.bf16.msra.mxu0 %v1973
    %2211 = vmatprep.subr.bf16.mxu0 %v1970
    %2212 = vmatpush2.bf16.msra.mxu0 %v1969
    %2213 = vmatprep.subr.bf16.mxu0 %v1966
    %2214 = vmatpush2.bf16.msra.mxu0 %v1965
    %2215 = vmatprep.subr.bf16.mxu0 %v1962
    %2216 = vmatpush2.bf16.msra.mxu0 %v1961
    %2217 = vmatprep.mubr.bf16.mxu0 %v1392
    %2218 = vmatmul.mubr.bf16.gmra.mxu0 %v1391
    %v2219 = vpop.f32.mrf.mxu0
    %v2220 = vadd.f32 %v1528, %v2219
    %v2221 = vpop.f32.mrf.mxu0
    %v2222 = vadd.f32 %v1532, %v2221
    %v2223 = vpop.f32.mrf.mxu0
    %v2224 = vpop.f32.mrf.mxu0
    %2225 = vdwg.mxu0
    %2226 = vmatprep.subr.bf16.mxu0 %v2022
    %2227 = vmatpush1.bf16.msra.mxu0 %v2021
    %2228 = vmatprep.subr.bf16.mxu0 %v2018
    %2229 = vmatpush1.bf16.msra.mxu0 %v2017
    %2230 = vmatprep.subr.bf16.mxu0 %v2014
    %2231 = vmatpush1.bf16.msra.mxu0 %v2013
    %2232 = vmatprep.subr.bf16.mxu0 %v2010
    %2233 = vmatpush1.bf16.msra.mxu0 %v2009
    %2234 = vmatprep.subr.bf16.mxu0 %v2006
    %2235 = vmatpush1.bf16.msra.mxu0 %v2005
    %2236 = vmatprep.subr.bf16.mxu0 %v2002
    %2237 = vmatpush1.bf16.msra.mxu0 %v2001
    %2238 = vmatprep.subr.bf16.mxu0 %v1998
    %2239 = vmatpush1.bf16.msra.mxu0 %v1997
    %2240 = vmatprep.subr.bf16.mxu0 %v1994
    %2241 = vmatpush1.bf16.msra.mxu0 %v1993
    %2242 = vmatprep.subr.bf16.mxu0 %v2054
    %2243 = vmatpush2.bf16.msra.mxu0 %v2053
    %2244 = vmatprep.subr.bf16.mxu0 %v2050
    %2245 = vmatpush2.bf16.msra.mxu0 %v2049
    %2246 = vmatprep.subr.bf16.mxu0 %v2046
    %2247 = vmatpush2.bf16.msra.mxu0 %v2045
    %2248 = vmatprep.subr.bf16.mxu0 %v2042
    %2249 = vmatpush2.bf16.msra.mxu0 %v2041
    %2250 = vmatprep.subr.bf16.mxu0 %v2038
    %2251 = vmatpush2.bf16.msra.mxu0 %v2037
    %2252 = vmatprep.subr.bf16.mxu0 %v2034
    %2253 = vmatpush2.bf16.msra.mxu0 %v2033
    %2254 = vmatprep.subr.bf16.mxu0 %v2030
    %2255 = vmatpush2.bf16.msra.mxu0 %v2029
    %2256 = vmatprep.subr.bf16.mxu0 %v2026
    %2257 = vmatpush2.bf16.msra.mxu0 %v2025
    %2258 = vmatprep.mubr.bf16.mxu0 %v1394
    %2259 = vmatmul.mubr.bf16.gmra.mxu0 %v1393
    %v2260 = vpop.f32.mrf.mxu0
    %v2261 = vadd.f32 %v2220, %v2260
    %v2262 = vpop.f32.mrf.mxu0
    %v2263 = vadd.f32 %v2222, %v2262
    %v2264 = vpop.f32.mrf.mxu0
    %v2265 = vpop.f32.mrf.mxu0
    %2266 = vdwg.mxu0
    %2267 = vmatprep.subr.bf16.mxu0 %v1960
    %2268 = vmatpush1.bf16.msra.mxu0 %v1959
    %2269 = vmatprep.subr.bf16.mxu0 %v1956
    %2270 = vmatpush1.bf16.msra.mxu0 %v1955
    %2271 = vmatprep.subr.bf16.mxu0 %v1952
    %2272 = vmatpush1.bf16.msra.mxu0 %v1951
    %2273 = vmatprep.subr.bf16.mxu0 %v1948
    %2274 = vmatpush1.bf16.msra.mxu0 %v1947
    %2275 = vmatprep.subr.bf16.mxu0 %v1944
    %2276 = vmatpush1.bf16.msra.mxu0 %v1943
    %2277 = vmatprep.subr.bf16.mxu0 %v1940
    %2278 = vmatpush1.bf16.msra.mxu0 %v1939
    %2279 = vmatprep.subr.bf16.mxu0 %v1936
    %2280 = vmatpush1.bf16.msra.mxu0 %v1935
    %2281 = vmatprep.subr.bf16.mxu0 %v1932
    %2282 = vmatpush1.bf16.msra.mxu0 %v1931
    %2283 = vmatprep.subr.bf16.mxu0 %v1992
    %2284 = vmatpush2.bf16.msra.mxu0 %v1991
    %2285 = vmatprep.subr.bf16.mxu0 %v1988
    %2286 = vmatpush2.bf16.msra.mxu0 %v1987
    %2287 = vmatprep.subr.bf16.mxu0 %v1984
    %2288 = vmatpush2.bf16.msra.mxu0 %v1983
    %2289 = vmatprep.subr.bf16.mxu0 %v1980
    %2290 = vmatpush2.bf16.msra.mxu0 %v1979
    %2291 = vmatprep.subr.bf16.mxu0 %v1976
    %2292 = vmatpush2.bf16.msra.mxu0 %v1975
    %2293 = vmatprep.subr.bf16.mxu0 %v1972
    %2294 = vmatpush2.bf16.msra.mxu0 %v1971
    %2295 = vmatprep.subr.bf16.mxu0 %v1968
    %2296 = vmatpush2.bf16.msra.mxu0 %v1967
    %2297 = vmatprep.subr.bf16.mxu0 %v1964
    %2298 = vmatpush2.bf16.msra.mxu0 %v1963
    %2299 = vmatprep.mubr.bf16.mxu0 %v1392
    %2300 = vmatmul.mubr.bf16.gmra.mxu0 %v1391
    %v2301 = vpop.f32.mrf.mxu0
    %v2302 = vadd.f32 %v1536, %v2301
    %v2303 = vpop.f32.mrf.mxu0
    %v2304 = vadd.f32 %v1540, %v2303
    %v2305 = vpop.f32.mrf.mxu0
    %v2306 = vpop.f32.mrf.mxu0
    %2307 = vdwg.mxu0
    %2308 = vmatprep.subr.bf16.mxu0 %v2024
    %2309 = vmatpush1.bf16.msra.mxu0 %v2023
    %2310 = vmatprep.subr.bf16.mxu0 %v2020
    %2311 = vmatpush1.bf16.msra.mxu0 %v2019
    %2312 = vmatprep.subr.bf16.mxu0 %v2016
    %2313 = vmatpush1.bf16.msra.mxu0 %v2015
    %2314 = vmatprep.subr.bf16.mxu0 %v2012
    %2315 = vmatpush1.bf16.msra.mxu0 %v2011
    %2316 = vmatprep.subr.bf16.mxu0 %v2008
    %2317 = vmatpush1.bf16.msra.mxu0 %v2007
    %2318 = vmatprep.subr.bf16.mxu0 %v2004
    %2319 = vmatpush1.bf16.msra.mxu0 %v2003
    %2320 = vmatprep.subr.bf16.mxu0 %v2000
    %2321 = vmatpush1.bf16.msra.mxu0 %v1999
    %2322 = vmatprep.subr.bf16.mxu0 %v1996
    %2323 = vmatpush1.bf16.msra.mxu0 %v1995
    %2324 = vmatprep.subr.bf16.mxu0 %v2056
    %2325 = vmatpush2.bf16.msra.mxu0 %v2055
    %2326 = vmatprep.subr.bf16.mxu0 %v2052
    %2327 = vmatpush2.bf16.msra.mxu0 %v2051
    %2328 = vmatprep.subr.bf16.mxu0 %v2048
    %2329 = vmatpush2.bf16.msra.mxu0 %v2047
    %2330 = vmatprep.subr.bf16.mxu0 %v2044
    %2331 = vmatpush2.bf16.msra.mxu0 %v2043
    %2332 = vmatprep.subr.bf16.mxu0 %v2040
    %2333 = vmatpush2.bf16.msra.mxu0 %v2039
    %2334 = vmatprep.subr.bf16.mxu0 %v2036
    %2335 = vmatpush2.bf16.msra.mxu0 %v2035
    %2336 = vmatprep.subr.bf16.mxu0 %v2032
    %2337 = vmatpush2.bf16.msra.mxu0 %v2031
    %2338 = vmatprep.subr.bf16.mxu0 %v2028
    %2339 = vmatpush2.bf16.msra.mxu0 %v2027
    %2340 = vmatprep.mubr.bf16.mxu0 %v1394
    %2341 = vmatmul.mubr.bf16.gmra.mxu0 %v1393
    %v2342 = vpop.f32.mrf.mxu0
    %v2343 = vadd.f32 %v2302, %v2342
    %v2344 = vpop.f32.mrf.mxu0
    %v2345 = vadd.f32 %v2304, %v2344
    %v2346 = vpop.f32.mrf.mxu0
    %v2347 = vpop.f32.mrf.mxu0
    %2348 = vdwg.mxu0
    %vm2349 = vcmp.ge.f32.partialorder %v2261, 0.0
    %vm2350 = vcmp.ge.f32.partialorder %v2263, 0.0
    %vm2351 = vcmp.ge.f32.partialorder %v2343, 0.0
    %vm2352 = vcmp.ge.f32.partialorder %v2345, 0.0
    %v2353 = vmul.f32 %v2261, 0.2
    %v2354 = vmul.f32 %v2263, 0.2
    %v2355 = vmul.f32 %v2343, 0.2
    %v2356 = vmul.f32 %v2345, 0.2
    %v2357 = vsel %vm2349, %v2261, %v2353
    %v2358 = vsel %vm2350, %v2263, %v2354
    %v2359 = vsel %vm2351, %v2343, %v2355
    %v2360 = vsel %vm2352, %v2345, %v2356
    %v2361 = vpack.c.bf16 %v2357, %v2357
    %v2362 = vpack.c.bf16 %v2358, %v2358
    %v2363 = vpack.c.bf16 %v2359, %v2359
    %v2364 = vpack.c.bf16 %v2360, %v2360
    %v2365 = vld [vmem:[#allocation11] sm:$0xf]
    %v2366 = vld [vmem:[#allocation11 + $0x4] sm:$0xf]
    %v2367 = vld [vmem:[#allocation11 + $0x8] sm:$0xf]
    %v2368 = vld [vmem:[#allocation11 + $0xc] sm:$0xf]
    %v2369 = vld [vmem:[#allocation11 + $0x10] sm:$0xf]
    %v2370 = vld [vmem:[#allocation11 + $0x14] sm:$0xf]
    %v2371 = vld [vmem:[#allocation11 + $0x18] sm:$0xf]
    %v2372 = vld [vmem:[#allocation11 + $0x1c] sm:$0xf]
    %v2373 = vld [vmem:[#allocation11 + $0x20] sm:$0xf]
    %v2374 = vld [vmem:[#allocation11 + $0x24] sm:$0xf]
    %v2375 = vld [vmem:[#allocation11 + $0x28] sm:$0xf]
    %v2376 = vld [vmem:[#allocation11 + $0x2c] sm:$0xf]
    %v2377 = vld [vmem:[#allocation11 + $0x30] sm:$0xf]
    %v2378 = vld [vmem:[#allocation11 + $0x34] sm:$0xf]
    %v2379 = vld [vmem:[#allocation11 + $0x38] sm:$0xf]
    %v2380 = vld [vmem:[#allocation11 + $0x3c] sm:$0xf]
    %v2381 = vld [vmem:[#allocation11 + $0x40] sm:$0xf]
    %v2382 = vld [vmem:[#allocation11 + $0x44] sm:$0xf]
    %v2383 = vld [vmem:[#allocation11 + $0x48] sm:$0xf]
    %v2384 = vld [vmem:[#allocation11 + $0x4c] sm:$0xf]
    %v2385 = vld [vmem:[#allocation11 + $0x50] sm:$0xf]
    %v2386 = vld [vmem:[#allocation11 + $0x54] sm:$0xf]
    %v2387 = vld [vmem:[#allocation11 + $0x58] sm:$0xf]
    %v2388 = vld [vmem:[#allocation11 + $0x5c] sm:$0xf]
    %v2389 = vld [vmem:[#allocation11 + $0x60] sm:$0xf]
    %v2390 = vld [vmem:[#allocation11 + $0x64] sm:$0xf]
    %v2391 = vld [vmem:[#allocation11 + $0x68] sm:$0xf]
    %v2392 = vld [vmem:[#allocation11 + $0x6c] sm:$0xf]
    %v2393 = vld [vmem:[#allocation11 + $0x70] sm:$0xf]
    %v2394 = vld [vmem:[#allocation11 + $0x74] sm:$0xf]
    %v2395 = vld [vmem:[#allocation11 + $0x78] sm:$0xf]
    %v2396 = vld [vmem:[#allocation11 + $0x7c] sm:$0xf]
    %v2397 = vld [vmem:[#allocation11 + $0x80] sm:$0xf]
    %v2398 = vld [vmem:[#allocation11 + $0x84] sm:$0xf]
    %v2399 = vld [vmem:[#allocation11 + $0x88] sm:$0xf]
    %v2400 = vld [vmem:[#allocation11 + $0x8c] sm:$0xf]
    %v2401 = vld [vmem:[#allocation11 + $0x90] sm:$0xf]
    %v2402 = vld [vmem:[#allocation11 + $0x94] sm:$0xf]
    %v2403 = vld [vmem:[#allocation11 + $0x98] sm:$0xf]
    %v2404 = vld [vmem:[#allocation11 + $0x9c] sm:$0xf]
    %v2405 = vld [vmem:[#allocation11 + $0xa0] sm:$0xf]
    %v2406 = vld [vmem:[#allocation11 + $0xa4] sm:$0xf]
    %v2407 = vld [vmem:[#allocation11 + $0xa8] sm:$0xf]
    %v2408 = vld [vmem:[#allocation11 + $0xac] sm:$0xf]
    %v2409 = vld [vmem:[#allocation11 + $0xb0] sm:$0xf]
    %v2410 = vld [vmem:[#allocation11 + $0xb4] sm:$0xf]
    %v2411 = vld [vmem:[#allocation11 + $0xb8] sm:$0xf]
    %v2412 = vld [vmem:[#allocation11 + $0xbc] sm:$0xf]
    %v2413 = vld [vmem:[#allocation11 + $0xc0] sm:$0xf]
    %v2414 = vld [vmem:[#allocation11 + $0xc4] sm:$0xf]
    %v2415 = vld [vmem:[#allocation11 + $0xc8] sm:$0xf]
    %v2416 = vld [vmem:[#allocation11 + $0xcc] sm:$0xf]
    %v2417 = vld [vmem:[#allocation11 + $0xd0] sm:$0xf]
    %v2418 = vld [vmem:[#allocation11 + $0xd4] sm:$0xf]
    %v2419 = vld [vmem:[#allocation11 + $0xd8] sm:$0xf]
    %v2420 = vld [vmem:[#allocation11 + $0xdc] sm:$0xf]
    %v2421 = vld [vmem:[#allocation11 + $0xe0] sm:$0xf]
    %v2422 = vld [vmem:[#allocation11 + $0xe4] sm:$0xf]
    %v2423 = vld [vmem:[#allocation11 + $0xe8] sm:$0xf]
    %v2424 = vld [vmem:[#allocation11 + $0xec] sm:$0xf]
    %v2425 = vld [vmem:[#allocation11 + $0xf0] sm:$0xf]
    %v2426 = vld [vmem:[#allocation11 + $0xf4] sm:$0xf]
    %v2427 = vld [vmem:[#allocation11 + $0xf8] sm:$0xf]
    %v2428 = vld [vmem:[#allocation11 + $0xfc] sm:$0xf]
    %v2429 = vld [vmem:[%s8] sm:$0x1]
    %v2431 = vlaneseq
    %v2432 = vshrl.u32 %v2431, 7
    %v2433 = vsub.s32 0, %v2432
    %v2434 = vrot.slane %v2429, %v2433
    %v2500 = vunpack.c.l.b16 %v2365
    %v2501 = vunpack.c.l.b16 %v2366
    %v2502 = vunpack.c.l.b16 %v2367
    %v2503 = vunpack.c.l.b16 %v2368
    %v2504 = vunpack.c.l.b16 %v2369
    %v2505 = vunpack.c.l.b16 %v2370
    %v2506 = vunpack.c.l.b16 %v2371
    %v2507 = vunpack.c.l.b16 %v2372
    %v2508 = vunpack.c.l.b16 %v2373
    %v2509 = vunpack.c.l.b16 %v2374
    %v2510 = vunpack.c.l.b16 %v2375
    %v2511 = vunpack.c.l.b16 %v2376
    %v2512 = vunpack.c.l.b16 %v2377
    %v2513 = vunpack.c.l.b16 %v2378
    %v2514 = vunpack.c.l.b16 %v2379
    %v2515 = vunpack.c.l.b16 %v2380
    %v2516 = vunpack.c.l.b16 %v2381
    %v2517 = vunpack.c.l.b16 %v2382
    %v2518 = vunpack.c.l.b16 %v2383
    %v2519 = vunpack.c.l.b16 %v2384
    %v2520 = vunpack.c.l.b16 %v2385
    %v2521 = vunpack.c.l.b16 %v2386
    %v2522 = vunpack.c.l.b16 %v2387
    %v2523 = vunpack.c.l.b16 %v2388
    %v2524 = vunpack.c.l.b16 %v2389
    %v2525 = vunpack.c.l.b16 %v2390
    %v2526 = vunpack.c.l.b16 %v2391
    %v2527 = vunpack.c.l.b16 %v2392
    %v2528 = vunpack.c.l.b16 %v2393
    %v2529 = vunpack.c.l.b16 %v2394
    %v2530 = vunpack.c.l.b16 %v2395
    %v2531 = vunpack.c.l.b16 %v2396
    %v2532 = vunpack.c.l.b16 %v2397
    %v2533 = vunpack.c.l.b16 %v2398
    %v2534 = vunpack.c.l.b16 %v2399
    %v2535 = vunpack.c.l.b16 %v2400
    %v2536 = vunpack.c.l.b16 %v2401
    %v2537 = vunpack.c.l.b16 %v2402
    %v2538 = vunpack.c.l.b16 %v2403
    %v2539 = vunpack.c.l.b16 %v2404
    %v2540 = vunpack.c.l.b16 %v2405
    %v2541 = vunpack.c.l.b16 %v2406
    %v2542 = vunpack.c.l.b16 %v2407
    %v2543 = vunpack.c.l.b16 %v2408
    %v2544 = vunpack.c.l.b16 %v2409
    %v2545 = vunpack.c.l.b16 %v2410
    %v2546 = vunpack.c.l.b16 %v2411
    %v2547 = vunpack.c.l.b16 %v2412
    %v2548 = vunpack.c.l.b16 %v2413
    %v2549 = vunpack.c.l.b16 %v2414
    %v2550 = vunpack.c.l.b16 %v2415
    %v2551 = vunpack.c.l.b16 %v2416
    %v2552 = vunpack.c.l.b16 %v2417
    %v2553 = vunpack.c.l.b16 %v2418
    %v2554 = vunpack.c.l.b16 %v2419
    %v2555 = vunpack.c.l.b16 %v2420
    %v2556 = vunpack.c.l.b16 %v2421
    %v2557 = vunpack.c.l.b16 %v2422
    %v2558 = vunpack.c.l.b16 %v2423
    %v2559 = vunpack.c.l.b16 %v2424
    %v2560 = vunpack.c.l.b16 %v2425
    %v2561 = vunpack.c.l.b16 %v2426
    %v2562 = vunpack.c.l.b16 %v2427
    %v2563 = vunpack.c.l.b16 %v2428
    %v2564 = vpack.c.b16 %v2501, %v2500
    %v2565 = vpack.c.b16 %v2503, %v2502
    %v2566 = vpack.c.b16 %v2505, %v2504
    %v2567 = vpack.c.b16 %v2507, %v2506
    %v2568 = vpack.c.b16 %v2509, %v2508
    %v2569 = vpack.c.b16 %v2511, %v2510
    %v2570 = vpack.c.b16 %v2513, %v2512
    %v2571 = vpack.c.b16 %v2515, %v2514
    %v2572 = vpack.c.b16 %v2517, %v2516
    %v2573 = vpack.c.b16 %v2519, %v2518
    %v2574 = vpack.c.b16 %v2521, %v2520
    %v2575 = vpack.c.b16 %v2523, %v2522
    %v2576 = vpack.c.b16 %v2525, %v2524
    %v2577 = vpack.c.b16 %v2527, %v2526
    %v2578 = vpack.c.b16 %v2529, %v2528
    %v2579 = vpack.c.b16 %v2531, %v2530
    %v2580 = vpack.c.b16 %v2533, %v2532
    %v2581 = vpack.c.b16 %v2535, %v2534
    %v2582 = vpack.c.b16 %v2537, %v2536
    %v2583 = vpack.c.b16 %v2539, %v2538
    %v2584 = vpack.c.b16 %v2541, %v2540
    %v2585 = vpack.c.b16 %v2543, %v2542
    %v2586 = vpack.c.b16 %v2545, %v2544
    %v2587 = vpack.c.b16 %v2547, %v2546
    %v2588 = vpack.c.b16 %v2549, %v2548
    %v2589 = vpack.c.b16 %v2551, %v2550
    %v2590 = vpack.c.b16 %v2553, %v2552
    %v2591 = vpack.c.b16 %v2555, %v2554
    %v2592 = vpack.c.b16 %v2557, %v2556
    %v2593 = vpack.c.b16 %v2559, %v2558
    %v2594 = vpack.c.b16 %v2561, %v2560
    %v2595 = vpack.c.b16 %v2563, %v2562
    %2628 = vmatprep.subr.bf16.mxu0 0
    %2629 = vmatpush1.bf16.msra.mxu0 %v2571
    %2630 = vmatprep.subr.bf16.mxu0 0
    %2631 = vmatpush1.bf16.msra.mxu0 %v2570
    %2632 = vmatprep.subr.bf16.mxu0 0
    %2633 = vmatpush1.bf16.msra.mxu0 %v2569
    %2634 = vmatprep.subr.bf16.mxu0 0
    %2635 = vmatpush1.bf16.msra.mxu0 %v2568
    %2636 = vmatprep.subr.bf16.mxu0 0
    %2637 = vmatpush1.bf16.msra.mxu0 %v2567
    %2638 = vmatprep.subr.bf16.mxu0 0
    %2639 = vmatpush1.bf16.msra.mxu0 %v2566
    %2640 = vmatprep.subr.bf16.mxu0 0
    %2641 = vmatpush1.bf16.msra.mxu0 %v2565
    %2642 = vmatprep.subr.bf16.mxu0 0
    %2643 = vmatpush1.bf16.msra.mxu0 %v2564
    %2644 = vmatprep.subr.bf16.mxu0 0
    %2645 = vmatpush2.bf16.msra.mxu0 %v2579
    %2646 = vmatprep.subr.bf16.mxu0 0
    %2647 = vmatpush2.bf16.msra.mxu0 %v2578
    %2648 = vmatprep.subr.bf16.mxu0 0
    %2649 = vmatpush2.bf16.msra.mxu0 %v2577
    %2650 = vmatprep.subr.bf16.mxu0 0
    %2651 = vmatpush2.bf16.msra.mxu0 %v2576
    %2652 = vmatprep.subr.bf16.mxu0 0
    %2653 = vmatpush2.bf16.msra.mxu0 %v2575
    %2654 = vmatprep.subr.bf16.mxu0 0
    %2655 = vmatpush2.bf16.msra.mxu0 %v2574
    %2656 = vmatprep.subr.bf16.mxu0 0
    %2657 = vmatpush2.bf16.msra.mxu0 %v2573
    %2658 = vmatprep.subr.bf16.mxu0 0
    %2659 = vmatpush2.bf16.msra.mxu0 %v2572
    %2660 = vmatprep.mubr.bf16.mxu0 %v2362
    %2661 = vmatmul.mubr.bf16.gmra.mxu0 %v2361
    %v2662 = vpop.f32.mrf.mxu0
    %v2663 = vadd.f32 %v2434, %v2662
    %v2664 = vpop.f32.mrf.mxu0
    %v2665 = vpop.f32.mrf.mxu0
    %v2666 = vpop.f32.mrf.mxu0
    %2667 = vdwg.mxu0
    %2668 = vmatprep.subr.bf16.mxu0 0
    %2669 = vmatpush1.bf16.msra.mxu0 %v2587
    %2670 = vmatprep.subr.bf16.mxu0 0
    %2671 = vmatpush1.bf16.msra.mxu0 %v2586
    %2672 = vmatprep.subr.bf16.mxu0 0
    %2673 = vmatpush1.bf16.msra.mxu0 %v2585
    %2674 = vmatprep.subr.bf16.mxu0 0
    %2675 = vmatpush1.bf16.msra.mxu0 %v2584
    %2676 = vmatprep.subr.bf16.mxu0 0
    %2677 = vmatpush1.bf16.msra.mxu0 %v2583
    %2678 = vmatprep.subr.bf16.mxu0 0
    %2679 = vmatpush1.bf16.msra.mxu0 %v2582
    %2680 = vmatprep.subr.bf16.mxu0 0
    %2681 = vmatpush1.bf16.msra.mxu0 %v2581
    %2682 = vmatprep.subr.bf16.mxu0 0
    %2683 = vmatpush1.bf16.msra.mxu0 %v2580
    %2684 = vmatprep.subr.bf16.mxu0 0
    %2685 = vmatpush2.bf16.msra.mxu0 %v2595
    %2686 = vmatprep.subr.bf16.mxu0 0
    %2687 = vmatpush2.bf16.msra.mxu0 %v2594
    %2688 = vmatprep.subr.bf16.mxu0 0
    %2689 = vmatpush2.bf16.msra.mxu0 %v2593
    %2690 = vmatprep.subr.bf16.mxu0 0
    %2691 = vmatpush2.bf16.msra.mxu0 %v2592
    %2692 = vmatprep.subr.bf16.mxu0 0
    %2693 = vmatpush2.bf16.msra.mxu0 %v2591
    %2694 = vmatprep.subr.bf16.mxu0 0
    %2695 = vmatpush2.bf16.msra.mxu0 %v2590
    %2696 = vmatprep.subr.bf16.mxu0 0
    %2697 = vmatpush2.bf16.msra.mxu0 %v2589
    %2698 = vmatprep.subr.bf16.mxu0 0
    %2699 = vmatpush2.bf16.msra.mxu0 %v2588
    %2700 = vmatprep.mubr.bf16.mxu0 %v2364
    %2701 = vmatmul.mubr.bf16.gmra.mxu0 %v2363
    %v2702 = vpop.f32.mrf.mxu0
    %v2703 = vadd.f32 %v2663, %v2702
    %v2704 = vpop.f32.mrf.mxu0
    %v2705 = vpop.f32.mrf.mxu0
    %v2706 = vpop.f32.mrf.mxu0
    %2707 = vdwg.mxu0
    %v2708 = vpack.c.bf16 %v2703, %v2703
    %2709 = vst [vmem:[#allocation13] sm:$0xf] %v2708
    // Predicated region
    $region62: #{tpu_custom_call.1} parent=1 // pred_check
      _
    $region63: #{tpu_custom_call.1} parent=1 // pred_check_branch
      %2711 = sbr.rel (0) target = $region65
    $region64: #{tpu_custom_call.1} parent=1 // pred_region
      %s2713 = ssub.s32 64, 64
      %2714 = vsyncadd [#allocation4], %s2713
      %s2716 = sshll.u32 [#allocation13], 4
      %s2717 = int_to_ptr.vmem [resolvable:$true] %s2716
      %2719 = dma.vmem_to_hbm [thread:$0]  %s2717, 64, %s9, [#allocation4]
    $region65: #{tpu_custom_call.1} parent=1 // pred_fallthru
      _
    // Predicated region
    $region66: #{tpu_custom_call.1} parent=1 // pred_check
      _
    $region67: #{tpu_custom_call.1} parent=1 // pred_check_branch
      %2721 = sbr.rel (0) target = $region69
    $region68: #{tpu_custom_call.1} parent=1 // pred_region
      %2722 = dma.done [#allocation4], 64
    $region69: #{tpu_custom_call.1} parent=1 // pred_fallthru
      _
    %2723 = vsyncpa [#allocation3], 1
    %2724 = vsyncpa [#allocation6], 1
    %2725 = vsyncpa [#allocation9], 1
    %2726 = vsyncpa [#allocation12], 1
    %2727 = vsyncpa [#allocation4], 1

</llo_original>
